<compile_context>
chip_gen: v5e
topology: v5e:2x2
jax: 0.10.0
libtpu: 0.0.40
codegen_flags: <defaults>
</compile_context>

<pallas_src>
import jax
import jax.numpy as jnp
from jax import lax
from jax.experimental import pallas as pl
from jax.experimental.pallas import tpu as pltpu

K_DIM = 32          # embedding dim k
NUM_HEADS = 4
HEAD_DIM = K_DIM // NUM_HEADS
DEPTH = 2
L_TGT = 8           # query (x) sequence length
S_SRC = 8           # key/value (enc_out) sequence length
BATCH = 2
EPS = 1e-5          # PyTorch LayerNorm default eps


# --------------------------------------------------------------------------------------
# Fused decoder kernel: one invocation, all layers, batch folded into rows.
# Slab layout per layer (rows, 128 lanes), k = 32, 4k = 128:
#   rows 0:k        [Wq^T*scale | Wk^T | Wv^T | Wo^T]        (k, 4k)
#   rows k:2k       W1^T  (ff[0].weight.T)                   (k, 4k)
#   rows 2k:3k      W2    (ff[2].weight, contract on dim 1)  (k, 4k)
#   row  3k         [bq*scale | bk | bv | 0]
#   row  3k+1       b1
#   row  3k+2       [ln1w | ln1b | ln2w | ln2b]
#   row  3k+3       [bo | b2 | 0 | 0]
# --------------------------------------------------------------------------------------
def make_decoder_kernel(depth, batch, k, n_heads):
    hd = k // n_heads

    def kernel(x_ref, e_ref, w_ref, out_ref):
        x = x_ref[...]                      # (L*B, k)  rows ordered (l, b)
        e = e_ref[...]                      # (S*B, k)  rows ordered (s, b)
        LB, SB = x.shape[0], e.shape[0]

        # Block-diagonal additive score bias: folded rows only attend within their batch.
        row_b = lax.broadcasted_iota(jnp.int32, (LB, SB), 0) % batch
        col_b = lax.broadcasted_iota(jnp.int32, (LB, SB), 1) % batch
        score_bias = jnp.where(row_b == col_b, 0.0, -1e30).astype(jnp.float32)

        for l in range(depth):                              # static, unrolled layer loop
            wproj = w_ref[l, 0:k, :]                        # (k, 4k)
            w1T   = w_ref[l, k:2 * k, :]                    # (k, 4k)
            w2    = w_ref[l, 2 * k:3 * k, :]                # (k, 4k)
            bqkv  = w_ref[l, 3 * k:3 * k + 1, :]            # (1, 4k)
            b1    = w_ref[l, 3 * k + 1:3 * k + 2, :]        # (1, 4k)
            lnrow = w_ref[l, 3 * k + 2:3 * k + 3, :]        # (1, 4k)
            misc  = w_ref[l, 3 * k + 3:3 * k + 4, :]        # (1, 4k) [bo | b2 | 0 | 0]

            # Fused Q/K/V(+O) projections: two 128-wide MXU dots per layer.
            proj_x = jnp.dot(x, wproj, preferred_element_type=jnp.float32) + bqkv
            proj_e = jnp.dot(e, wproj, preferred_element_type=jnp.float32) + bqkv
            woT = wproj[:, 3 * k:4 * k]                     # (k, k) out_proj.weight.T

            # ---- multi-head cross attention ----
            acc = jnp.zeros((LB, k), jnp.float32)
            for h in range(n_heads):                        # static, unrolled head loop
                qh = proj_x[:, h * hd:(h + 1) * hd]                     # (LB, hd)
                kh = proj_e[:, k + h * hd:k + (h + 1) * hd]             # (SB, hd)
                vh = proj_e[:, 2 * k + h * hd:2 * k + (h + 1) * hd]     # (SB, hd)

                # scores = qh @ kh^T (contraction over hd, no explicit transpose)
                s = lax.dot_general(qh, kh, (((1,), (1,)), ((), ())),
                                    preferred_element_type=jnp.float32) + score_bias
                s = s - jnp.max(s, axis=-1, keepdims=True)
                p = jnp.exp(s)
                p = p * pl.reciprocal(jnp.sum(p, axis=-1, keepdims=True), approx=True)

                oh = jnp.dot(p, vh, preferred_element_type=jnp.float32)  # (LB, hd)
                # uninterrupted accumulate chain (MRB in-place accumulation on v7x)
                acc = acc + jnp.dot(oh, woT[h * hd:(h + 1) * hd, :],
                                    preferred_element_type=jnp.float32)
            attn_out = acc + misc[:, 0:k]                   # + out_proj bias

            # ---- residual + LayerNorm1 ----
            y = attn_out + x
            mu = jnp.mean(y, axis=-1, keepdims=True)
            var = jnp.mean((y - mu) ** 2, axis=-1, keepdims=True)
            y = (y - mu) * lax.rsqrt(var + EPS) * lnrow[:, 0:k] + lnrow[:, k:2 * k]

            # ---- feed-forward: Linear(k,4k) -> ReLU -> Linear(4k,k) ----
            h1 = jnp.maximum(
                jnp.dot(y, w1T, preferred_element_type=jnp.float32) + b1, 0.0)
            ff = lax.dot_general(h1, w2, (((1,), (1,)), ((), ())),
                                 preferred_element_type=jnp.float32) + misc[:, k:2 * k]

            # ---- residual + LayerNorm2 ----
            z = ff + y
            mu2 = jnp.mean(z, axis=-1, keepdims=True)
            var2 = jnp.mean((z - mu2) ** 2, axis=-1, keepdims=True)
            x = (z - mu2) * lax.rsqrt(var2 + EPS) * lnrow[:, 2 * k:3 * k] + lnrow[:, 3 * k:4 * k]

        out_ref[...] = x

    return kernel


# --------------------------------------------------------------------------------------
# One-time parameter packing (outside the jitted per-call path)
# --------------------------------------------------------------------------------------
def pack_decoder_params(layer_params):
    k = K_DIM
    scale = HEAD_DIM ** -0.5
    slabs = []
    for params in layer_params:
        (wq, bq, wk, bk, wv, bv, wo, bo, ln1w, ln1b, w1, b1, w2, b2, ln2w, ln2b) = params
        wproj = jnp.concatenate([(wq * scale).T, wk.T, wv.T, wo.T], axis=1)      # (k, 4k)
        w1T = w1.T                                                               # (k, 4k)
        w2m = w2                                                                 # (k, 4k)
        b_qkv = jnp.concatenate([bq * scale, bk, bv,
                                 jnp.zeros((1, k), jnp.float32)], axis=1)        # (1, 4k)
        ln_row = jnp.concatenate([ln1w, ln1b, ln2w, ln2b], axis=1)               # (1, 4k)
        misc = jnp.concatenate([bo, b2, jnp.zeros((1, 2 * k), jnp.float32)], axis=1)
        slab = jnp.concatenate([wproj, w1T, w2m, b_qkv, b1, ln_row, misc], axis=0)
        slabs.append(slab)                                                       # (3k+4, 4k)
    return jnp.stack(slabs, axis=0)                                              # (D, 3k+4, 4k)


def decoder_forward(x, enc_out, w_slab):
    """x: (L, B, k), enc_out: (S, B, k), w_slab: pre-packed (D, 3k+4, 4k) -> (L, B, k)."""
    L, B, k = x.shape
    S = enc_out.shape[0]
    depth = w_slab.shape[0]

    x2 = x.reshape(L * B, k)           # free reshape: row order (seq, batch)
    e2 = enc_out.reshape(S * B, k)

    kernel = make_decoder_kernel(depth, B, k, NUM_HEADS)
    vspec = pl.BlockSpec(memory_space=pltpu.MemorySpace.VMEM)
    out2 = pl.pallas_call(
        kernel,
        out_shape=jax.ShapeDtypeStruct((L * B, k), jnp.float32),
        in_specs=[vspec, vspec, vspec],
        out_specs=vspec,
    )(x2, e2, w_slab)
    return out2.reshape(L, B, k)


# --------------------------------------------------------------------------------------
# Deterministic parameter init (shapes follow the nn.Module __init__, PyTorch layout)
# --------------------------------------------------------------------------------------
def init_block_params(key, k):
    ks = jax.random.split(key, 12)
    w = lambda kk, shape: jax.random.normal(kk, shape, jnp.float32) * 0.1
    b = lambda kk, n: jax.random.normal(kk, (1, n), jnp.float32) * 0.05
    wq, wk, wv, wo = (w(ks[i], (k, k)) for i in range(4))       # in_proj / out_proj weights
    w1 = w(ks[4], (4 * k, k))                                    # ff[0].weight
    w2 = w(ks[5], (k, 4 * k))                                    # ff[2].weight
    bq, bk, bv, bo = (b(ks[6 + i], k) for i in range(4))
    b1 = b(ks[10], 4 * k)
    b2 = b(ks[11], k)
    ln1w = jnp.ones((1, k), jnp.float32); ln1b = jnp.zeros((1, k), jnp.float32)
    ln2w = jnp.ones((1, k), jnp.float32); ln2b = jnp.zeros((1, k), jnp.float32)
    return [wq, bq, wk, bk, wv, bv, wo, bo, ln1w, ln1b, w1, b1, w2, b2, ln2w, ln2b]


# --------------------------------------------------------------------------------------
# Pure-JAX reference (PyTorch semantics) for the correctness check
# --------------------------------------------------------------------------------------
def ref_block(query, enc_out, params):
    (wq, bq, wk, bk, wv, bv, wo, bo, ln1w, ln1b, w1, b1, w2, b2, ln2w, ln2b) = params
    L, B, k = query.shape
    S = enc_out.shape[0]
    q = jnp.einsum('lbk,mk->lbm', query, wq) + bq
    kk = jnp.einsum('sbk,mk->sbm', enc_out, wk) + bk
    v = jnp.einsum('sbk,mk->sbm', enc_out, wv) + bv
    q = q.reshape(L, B, NUM_HEADS, HEAD_DIM) * (HEAD_DIM ** -0.5)
    kk = kk.reshape(S, B, NUM_HEADS, HEAD_DIM)
    v = v.reshape(S, B, NUM_HEADS, HEAD_DIM)
    scores = jnp.einsum('lbhd,sbhd->lbhs', q, kk)
    p = jax.nn.softmax(scores, axis=-1)
    attn = jnp.einsum('lbhs,sbhd->lbhd', p, v).reshape(L, B, k)
    attn_out = jnp.einsum('lbk,mk->lbm', attn, wo) + bo

    def layer_norm(x, w, b):
        mu = jnp.mean(x, axis=-1, keepdims=True)
        var = jnp.mean((x - mu) ** 2, axis=-1, keepdims=True)
        return (x - mu) * lax.rsqrt(var + EPS) * w + b

    x = layer_norm(attn_out + query, ln1w, ln1b)
    h1 = jnp.maximum(jnp.einsum('lbk,mk->lbm', x, w1) + b1, 0.0)
    ff = jnp.einsum('lbm,km->lbk', h1, w2) + b2
    return layer_norm(ff + x, ln2w, ln2b)


def ref_decoder(x, enc_out, layer_params):
    for params in layer_params:
        x = ref_block(x, enc_out, params)
    return x


if __name__ == "__main__":
    root = jax.random.PRNGKey(0)
    kx, ke, kp = jax.random.split(root, 3)

    x = jax.random.normal(kx, (L_TGT, BATCH, K_DIM), jnp.float32)        # query
    enc_out = jax.random.normal(ke, (S_SRC, BATCH, K_DIM), jnp.float32)  # encoder output

    layer_keys = jax.random.split(kp, DEPTH)
    layer_params = [init_block_params(layer_keys[i], K_DIM) for i in range(DEPTH)]

    # one-time packing at init (not part of the per-call jit path)
    w_slab = jax.block_until_ready(pack_decoder_params(layer_params))

    fwd = jax.jit(decoder_forward)
    out = jax.block_until_ready(fwd(x, enc_out, w_slab))

    ref = ref_decoder(x, enc_out, layer_params)
    assert out.shape == (L_TGT, BATCH, K_DIM)
    # tolerance loosened (2e-3) because softmax uses the EUP approx reciprocal
    assert jnp.allclose(out, ref, rtol=2e-3, atol=2e-3), "Pallas output mismatch vs reference"

    print("KERNEL_OK")
</pallas_src>

<mosaic_0001>
module attributes {stable_mosaic.version = 11 : i64} {
  func.func @kernel(%arg0: memref<16x32xf32, #tpu.memory_space<vmem>>, %arg1: memref<16x32xf32, #tpu.memory_space<vmem>>, %arg2: memref<2x100x128xf32, #tpu.memory_space<vmem>>, %arg3: memref<16x32xf32, #tpu.memory_space<vmem>>) attributes {dimension_semantics = [], scalar_prefetch = 0 : i64, scratch_operands = 0 : i64, tpu.core_type = #tpu.core_type<tc>} {
    %c0 = arith.constant 0 : index
    %c0_0 = arith.constant 0 : index
    %0 = vector.load %arg0[%c0, %c0_0] : memref<16x32xf32, #tpu.memory_space<vmem>>, vector<16x32xf32>
    %c0_1 = arith.constant 0 : index
    %c0_2 = arith.constant 0 : index
    %1 = vector.load %arg1[%c0_1, %c0_2] : memref<16x32xf32, #tpu.memory_space<vmem>>, vector<16x32xf32>
    %2 = tpu.iota {dimensions = array<i32: 0>} : vector<16x16xi32>
    %c2_i32 = arith.constant 2 : i32
    %c0_i32 = arith.constant 0 : i32
    %3 = arith.cmpi eq, %c2_i32, %c0_i32 : i32
    %c1_i32 = arith.constant 1 : i32
    %4 = arith.select %3, %c1_i32, %c2_i32 : i32
    %5 = vector.broadcast %4 : i32 to vector<16x16xi32>
    %6 = arith.remsi %2, %5 : vector<16x16xi32>
    %c0_i32_3 = arith.constant 0 : i32
    %7 = vector.broadcast %c0_i32_3 : i32 to vector<16x16xi32>
    %8 = arith.cmpi ne, %6, %7 : vector<16x16xi32>
    %c0_i32_4 = arith.constant 0 : i32
    %9 = vector.broadcast %c0_i32_4 : i32 to vector<16x16xi32>
    %10 = arith.cmpi slt, %6, %9 : vector<16x16xi32>
    %c0_i32_5 = arith.constant 0 : i32
    %11 = arith.cmpi slt, %4, %c0_i32_5 : i32
    %12 = vector.broadcast %11 : i1 to vector<16x16xi1>
    %13 = vector.broadcast %12 : vector<16x16xi1> to vector<16x16xi1>
    %14 = arith.xori %10, %13 : vector<16x16xi1>
    %15 = arith.andi %14, %8 : vector<16x16xi1>
    %16 = vector.broadcast %4 : i32 to vector<16x16xi32>
    %17 = arith.addi %6, %16 : vector<16x16xi32>
    %18 = arith.select %15, %17, %6 : vector<16x16xi1>, vector<16x16xi32>
    %19 = tpu.iota {dimensions = array<i32: 1>} : vector<16x16xi32>
    %c2_i32_6 = arith.constant 2 : i32
    %c0_i32_7 = arith.constant 0 : i32
    %20 = arith.cmpi eq, %c2_i32_6, %c0_i32_7 : i32
    %c1_i32_8 = arith.constant 1 : i32
    %21 = arith.select %20, %c1_i32_8, %c2_i32_6 : i32
    %22 = vector.broadcast %21 : i32 to vector<16x16xi32>
    %23 = arith.remsi %19, %22 : vector<16x16xi32>
    %c0_i32_9 = arith.constant 0 : i32
    %24 = vector.broadcast %c0_i32_9 : i32 to vector<16x16xi32>
    %25 = arith.cmpi ne, %23, %24 : vector<16x16xi32>
    %c0_i32_10 = arith.constant 0 : i32
    %26 = vector.broadcast %c0_i32_10 : i32 to vector<16x16xi32>
    %27 = arith.cmpi slt, %23, %26 : vector<16x16xi32>
    %c0_i32_11 = arith.constant 0 : i32
    %28 = arith.cmpi slt, %21, %c0_i32_11 : i32
    %29 = vector.broadcast %28 : i1 to vector<16x16xi1>
    %30 = vector.broadcast %29 : vector<16x16xi1> to vector<16x16xi1>
    %31 = arith.xori %27, %30 : vector<16x16xi1>
    %32 = arith.andi %31, %25 : vector<16x16xi1>
    %33 = vector.broadcast %21 : i32 to vector<16x16xi32>
    %34 = arith.addi %23, %33 : vector<16x16xi32>
    %35 = arith.select %32, %34, %23 : vector<16x16xi1>, vector<16x16xi32>
    %36 = arith.cmpi eq, %18, %35 : vector<16x16xi32>
    %cst = arith.constant 0.000000e+00 : f32
    %cst_12 = arith.constant -1.000000e+30 : f32
    %37 = vector.broadcast %cst : f32 to vector<16x16xf32>
    %38 = vector.broadcast %cst_12 : f32 to vector<16x16xf32>
    %39 = arith.select %36, %37, %38 : vector<16x16xi1>, vector<16x16xf32>
    %c0_13 = arith.constant 0 : index
    %c0_14 = arith.constant 0 : index
    %c0_15 = arith.constant 0 : index
    %40 = vector.load %arg2[%c0_13, %c0_14, %c0_15] : memref<2x100x128xf32, #tpu.memory_space<vmem>>, vector<1x32x128xf32>
    %41 = vector.shape_cast %40 : vector<1x32x128xf32> to vector<32x128xf32>
    %c0_16 = arith.constant 0 : index
    %c32 = arith.constant 32 : index
    %c0_17 = arith.constant 0 : index
    %42 = vector.load %arg2[%c0_16, %c32, %c0_17] : memref<2x100x128xf32, #tpu.memory_space<vmem>>, vector<1x32x128xf32>
    %43 = vector.shape_cast %42 : vector<1x32x128xf32> to vector<32x128xf32>
    %c0_18 = arith.constant 0 : index
    %c64 = arith.constant 64 : index
    %c0_19 = arith.constant 0 : index
    %44 = vector.load %arg2[%c0_18, %c64, %c0_19] : memref<2x100x128xf32, #tpu.memory_space<vmem>>, vector<1x32x128xf32>
    %45 = vector.shape_cast %44 : vector<1x32x128xf32> to vector<32x128xf32>
    %c0_20 = arith.constant 0 : index
    %c96 = arith.constant 96 : index
    %c0_21 = arith.constant 0 : index
    %46 = vector.load %arg2[%c0_20, %c96, %c0_21] : memref<2x100x128xf32, #tpu.memory_space<vmem>>, vector<1x1x128xf32>
    %47 = vector.shape_cast %46 : vector<1x1x128xf32> to vector<1x128xf32>
    %c0_22 = arith.constant 0 : index
    %c97 = arith.constant 97 : index
    %c0_23 = arith.constant 0 : index
    %48 = vector.load %arg2[%c0_22, %c97, %c0_23] : memref<2x100x128xf32, #tpu.memory_space<vmem>>, vector<1x1x128xf32>
    %49 = vector.shape_cast %48 : vector<1x1x128xf32> to vector<1x128xf32>
    %c0_24 = arith.constant 0 : index
    %c98 = arith.constant 98 : index
    %c0_25 = arith.constant 0 : index
    %50 = vector.load %arg2[%c0_24, %c98, %c0_25] : memref<2x100x128xf32, #tpu.memory_space<vmem>>, vector<1x1x128xf32>
    %51 = vector.shape_cast %50 : vector<1x1x128xf32> to vector<1x128xf32>
    %c0_26 = arith.constant 0 : index
    %c99 = arith.constant 99 : index
    %c0_27 = arith.constant 0 : index
    %52 = vector.load %arg2[%c0_26, %c99, %c0_27] : memref<2x100x128xf32, #tpu.memory_space<vmem>>, vector<1x1x128xf32>
    %53 = vector.shape_cast %52 : vector<1x1x128xf32> to vector<1x128xf32>
    %cst_28 = arith.constant dense<0.000000e+00> : vector<16x128xf32>
    %54 = tpu.matmul %0, %41, %cst_28 {dimension_numbers = #tpu.dot_dimension_numbers<[1], [0], [0], [1], [0, 0, 1, 1], [], []>} : vector<16x32xf32>, vector<32x128xf32>, vector<16x128xf32> -> vector<16x128xf32>
    %55 = vector.broadcast %47 : vector<1x128xf32> to vector<16x128xf32>
    %56 = arith.addf %54, %55 : vector<16x128xf32>
    %cst_29 = arith.constant dense<0.000000e+00> : vector<16x128xf32>
    %57 = tpu.matmul %1, %41, %cst_29 {dimension_numbers = #tpu.dot_dimension_numbers<[1], [0], [0], [1], [0, 0, 1, 1], [], []>} : vector<16x32xf32>, vector<32x128xf32>, vector<16x128xf32> -> vector<16x128xf32>
    %58 = vector.broadcast %47 : vector<1x128xf32> to vector<16x128xf32>
    %59 = arith.addf %57, %58 : vector<16x128xf32>
    %60 = vector.extract_strided_slice %41 {offsets = [0, 96], sizes = [32, 32], strides = [1, 1]} : vector<32x128xf32> to vector<32x32xf32>
    %cst_30 = arith.constant 0.000000e+00 : f32
    %61 = vector.broadcast %cst_30 : f32 to vector<16x32xf32>
    %62 = vector.extract_strided_slice %56 {offsets = [0, 0], sizes = [16, 8], strides = [1, 1]} : vector<16x128xf32> to vector<16x8xf32>
    %63 = vector.extract_strided_slice %59 {offsets = [0, 32], sizes = [16, 8], strides = [1, 1]} : vector<16x128xf32> to vector<16x8xf32>
    %64 = vector.extract_strided_slice %59 {offsets = [0, 64], sizes = [16, 8], strides = [1, 1]} : vector<16x128xf32> to vector<16x8xf32>
    %cst_31 = arith.constant dense<0.000000e+00> : vector<16x16xf32>
    %65 = tpu.matmul %62, %63, %cst_31 {dimension_numbers = #tpu.dot_dimension_numbers<[1], [1], [0], [0], [0, 0, 1, 0], [], []>} : vector<16x8xf32>, vector<16x8xf32>, vector<16x16xf32> -> vector<16x16xf32>
    %66 = arith.addf %65, %39 : vector<16x16xf32>
    %cst_32 = arith.constant dense<0xFF800000> : vector<16xf32>
    %67 = vector.multi_reduction <maximumf>, %66, %cst_32 [1] : vector<16x16xf32> to vector<16xf32>
    %68 = vector.shape_cast %67 : vector<16xf32> to vector<16x1xf32>
    %69 = vector.broadcast %68 : vector<16x1xf32> to vector<16x16xf32>
    %70 = arith.subf %66, %69 : vector<16x16xf32>
    %71 = math.exp %70 : vector<16x16xf32>
    %cst_33 = arith.constant dense<0.000000e+00> : vector<16xf32>
    %72 = vector.multi_reduction <add>, %71, %cst_33 [1] : vector<16x16xf32> to vector<16xf32>
    %73 = vector.shape_cast %72 : vector<16xf32> to vector<16x1xf32>
    %74 = tpu.reciprocal %73 {approx = true} : vector<16x1xf32> -> vector<16x1xf32>
    %75 = vector.broadcast %74 : vector<16x1xf32> to vector<16x16xf32>
    %76 = arith.mulf %71, %75 : vector<16x16xf32>
    %cst_34 = arith.constant dense<0.000000e+00> : vector<16x8xf32>
    %77 = tpu.matmul %76, %64, %cst_34 {dimension_numbers = #tpu.dot_dimension_numbers<[1], [0], [0], [1], [0, 0, 1, 1], [], []>} : vector<16x16xf32>, vector<16x8xf32>, vector<16x8xf32> -> vector<16x8xf32>
    %78 = vector.extract_strided_slice %60 {offsets = [0, 0], sizes = [8, 32], strides = [1, 1]} : vector<32x32xf32> to vector<8x32xf32>
    %cst_35 = arith.constant dense<0.000000e+00> : vector<16x32xf32>
    %79 = tpu.matmul %77, %78, %cst_35 {dimension_numbers = #tpu.dot_dimension_numbers<[1], [0], [0], [1], [0, 0, 1, 1], [], []>} : vector<16x8xf32>, vector<8x32xf32>, vector<16x32xf32> -> vector<16x32xf32>
    %80 = arith.addf %61, %79 : vector<16x32xf32>
    %81 = vector.extract_strided_slice %56 {offsets = [0, 8], sizes = [16, 8], strides = [1, 1]} : vector<16x128xf32> to vector<16x8xf32>
    %82 = vector.extract_strided_slice %59 {offsets = [0, 40], sizes = [16, 8], strides = [1, 1]} : vector<16x128xf32> to vector<16x8xf32>
    %83 = vector.extract_strided_slice %59 {offsets = [0, 72], sizes = [16, 8], strides = [1, 1]} : vector<16x128xf32> to vector<16x8xf32>
    %cst_36 = arith.constant dense<0.000000e+00> : vector<16x16xf32>
    %84 = tpu.matmul %81, %82, %cst_36 {dimension_numbers = #tpu.dot_dimension_numbers<[1], [1], [0], [0], [0, 0, 1, 0], [], []>} : vector<16x8xf32>, vector<16x8xf32>, vector<16x16xf32> -> vector<16x16xf32>
    %85 = arith.addf %84, %39 : vector<16x16xf32>
    %cst_37 = arith.constant dense<0xFF800000> : vector<16xf32>
    %86 = vector.multi_reduction <maximumf>, %85, %cst_37 [1] : vector<16x16xf32> to vector<16xf32>
    %87 = vector.shape_cast %86 : vector<16xf32> to vector<16x1xf32>
    %88 = vector.broadcast %87 : vector<16x1xf32> to vector<16x16xf32>
    %89 = arith.subf %85, %88 : vector<16x16xf32>
    %90 = math.exp %89 : vector<16x16xf32>
    %cst_38 = arith.constant dense<0.000000e+00> : vector<16xf32>
    %91 = vector.multi_reduction <add>, %90, %cst_38 [1] : vector<16x16xf32> to vector<16xf32>
    %92 = vector.shape_cast %91 : vector<16xf32> to vector<16x1xf32>
    %93 = tpu.reciprocal %92 {approx = true} : vector<16x1xf32> -> vector<16x1xf32>
    %94 = vector.broadcast %93 : vector<16x1xf32> to vector<16x16xf32>
    %95 = arith.mulf %90, %94 : vector<16x16xf32>
    %cst_39 = arith.constant dense<0.000000e+00> : vector<16x8xf32>
    %96 = tpu.matmul %95, %83, %cst_39 {dimension_numbers = #tpu.dot_dimension_numbers<[1], [0], [0], [1], [0, 0, 1, 1], [], []>} : vector<16x16xf32>, vector<16x8xf32>, vector<16x8xf32> -> vector<16x8xf32>
    %97 = vector.extract_strided_slice %60 {offsets = [8, 0], sizes = [8, 32], strides = [1, 1]} : vector<32x32xf32> to vector<8x32xf32>
    %cst_40 = arith.constant dense<0.000000e+00> : vector<16x32xf32>
    %98 = tpu.matmul %96, %97, %cst_40 {dimension_numbers = #tpu.dot_dimension_numbers<[1], [0], [0], [1], [0, 0, 1, 1], [], []>} : vector<16x8xf32>, vector<8x32xf32>, vector<16x32xf32> -> vector<16x32xf32>
    %99 = arith.addf %80, %98 : vector<16x32xf32>
    %100 = vector.extract_strided_slice %56 {offsets = [0, 16], sizes = [16, 8], strides = [1, 1]} : vector<16x128xf32> to vector<16x8xf32>
    %101 = vector.extract_strided_slice %59 {offsets = [0, 48], sizes = [16, 8], strides = [1, 1]} : vector<16x128xf32> to vector<16x8xf32>
    %102 = vector.extract_strided_slice %59 {offsets = [0, 80], sizes = [16, 8], strides = [1, 1]} : vector<16x128xf32> to vector<16x8xf32>
    %cst_41 = arith.constant dense<0.000000e+00> : vector<16x16xf32>
    %103 = tpu.matmul %100, %101, %cst_41 {dimension_numbers = #tpu.dot_dimension_numbers<[1], [1], [0], [0], [0, 0, 1, 0], [], []>} : vector<16x8xf32>, vector<16x8xf32>, vector<16x16xf32> -> vector<16x16xf32>
    %104 = arith.addf %103, %39 : vector<16x16xf32>
    %cst_42 = arith.constant dense<0xFF800000> : vector<16xf32>
    %105 = vector.multi_reduction <maximumf>, %104, %cst_42 [1] : vector<16x16xf32> to vector<16xf32>
    %106 = vector.shape_cast %105 : vector<16xf32> to vector<16x1xf32>
    %107 = vector.broadcast %106 : vector<16x1xf32> to vector<16x16xf32>
    %108 = arith.subf %104, %107 : vector<16x16xf32>
    %109 = math.exp %108 : vector<16x16xf32>
    %cst_43 = arith.constant dense<0.000000e+00> : vector<16xf32>
    %110 = vector.multi_reduction <add>, %109, %cst_43 [1] : vector<16x16xf32> to vector<16xf32>
    %111 = vector.shape_cast %110 : vector<16xf32> to vector<16x1xf32>
    %112 = tpu.reciprocal %111 {approx = true} : vector<16x1xf32> -> vector<16x1xf32>
    %113 = vector.broadcast %112 : vector<16x1xf32> to vector<16x16xf32>
    %114 = arith.mulf %109, %113 : vector<16x16xf32>
    %cst_44 = arith.constant dense<0.000000e+00> : vector<16x8xf32>
    %115 = tpu.matmul %114, %102, %cst_44 {dimension_numbers = #tpu.dot_dimension_numbers<[1], [0], [0], [1], [0, 0, 1, 1], [], []>} : vector<16x16xf32>, vector<16x8xf32>, vector<16x8xf32> -> vector<16x8xf32>
    %116 = vector.extract_strided_slice %60 {offsets = [16, 0], sizes = [8, 32], strides = [1, 1]} : vector<32x32xf32> to vector<8x32xf32>
    %cst_45 = arith.constant dense<0.000000e+00> : vector<16x32xf32>
    %117 = tpu.matmul %115, %116, %cst_45 {dimension_numbers = #tpu.dot_dimension_numbers<[1], [0], [0], [1], [0, 0, 1, 1], [], []>} : vector<16x8xf32>, vector<8x32xf32>, vector<16x32xf32> -> vector<16x32xf32>
    %118 = arith.addf %99, %117 : vector<16x32xf32>
    %119 = vector.extract_strided_slice %56 {offsets = [0, 24], sizes = [16, 8], strides = [1, 1]} : vector<16x128xf32> to vector<16x8xf32>
    %120 = vector.extract_strided_slice %59 {offsets = [0, 56], sizes = [16, 8], strides = [1, 1]} : vector<16x128xf32> to vector<16x8xf32>
    %121 = vector.extract_strided_slice %59 {offsets = [0, 88], sizes = [16, 8], strides = [1, 1]} : vector<16x128xf32> to vector<16x8xf32>
    %cst_46 = arith.constant dense<0.000000e+00> : vector<16x16xf32>
    %122 = tpu.matmul %119, %120, %cst_46 {dimension_numbers = #tpu.dot_dimension_numbers<[1], [1], [0], [0], [0, 0, 1, 0], [], []>} : vector<16x8xf32>, vector<16x8xf32>, vector<16x16xf32> -> vector<16x16xf32>
    %123 = arith.addf %122, %39 : vector<16x16xf32>
    %cst_47 = arith.constant dense<0xFF800000> : vector<16xf32>
    %124 = vector.multi_reduction <maximumf>, %123, %cst_47 [1] : vector<16x16xf32> to vector<16xf32>
    %125 = vector.shape_cast %124 : vector<16xf32> to vector<16x1xf32>
    %126 = vector.broadcast %125 : vector<16x1xf32> to vector<16x16xf32>
    %127 = arith.subf %123, %126 : vector<16x16xf32>
    %128 = math.exp %127 : vector<16x16xf32>
    %cst_48 = arith.constant dense<0.000000e+00> : vector<16xf32>
    %129 = vector.multi_reduction <add>, %128, %cst_48 [1] : vector<16x16xf32> to vector<16xf32>
    %130 = vector.shape_cast %129 : vector<16xf32> to vector<16x1xf32>
    %131 = tpu.reciprocal %130 {approx = true} : vector<16x1xf32> -> vector<16x1xf32>
    %132 = vector.broadcast %131 : vector<16x1xf32> to vector<16x16xf32>
    %133 = arith.mulf %128, %132 : vector<16x16xf32>
    %cst_49 = arith.constant dense<0.000000e+00> : vector<16x8xf32>
    %134 = tpu.matmul %133, %121, %cst_49 {dimension_numbers = #tpu.dot_dimension_numbers<[1], [0], [0], [1], [0, 0, 1, 1], [], []>} : vector<16x16xf32>, vector<16x8xf32>, vector<16x8xf32> -> vector<16x8xf32>
    %135 = vector.extract_strided_slice %60 {offsets = [24, 0], sizes = [8, 32], strides = [1, 1]} : vector<32x32xf32> to vector<8x32xf32>
    %cst_50 = arith.constant dense<0.000000e+00> : vector<16x32xf32>
    %136 = tpu.matmul %134, %135, %cst_50 {dimension_numbers = #tpu.dot_dimension_numbers<[1], [0], [0], [1], [0, 0, 1, 1], [], []>} : vector<16x8xf32>, vector<8x32xf32>, vector<16x32xf32> -> vector<16x32xf32>
    %137 = arith.addf %118, %136 : vector<16x32xf32>
    %138 = vector.extract_strided_slice %53 {offsets = [0, 0], sizes = [1, 32], strides = [1, 1]} : vector<1x128xf32> to vector<1x32xf32>
    %139 = vector.broadcast %138 : vector<1x32xf32> to vector<16x32xf32>
    %140 = arith.addf %137, %139 : vector<16x32xf32>
    %141 = arith.addf %140, %0 : vector<16x32xf32>
    %cst_51 = arith.constant dense<0.000000e+00> : vector<16xf32>
    %142 = vector.multi_reduction <add>, %141, %cst_51 [1] : vector<16x32xf32> to vector<16xf32>
    %143 = vector.shape_cast %142 : vector<16xf32> to vector<16x1xf32>
    %cst_52 = arith.constant 3.200000e+01 : f32
    %144 = vector.broadcast %cst_52 : f32 to vector<16x1xf32>
    %145 = arith.divf %143, %144 : vector<16x1xf32>
    %146 = vector.broadcast %145 : vector<16x1xf32> to vector<16x32xf32>
    %147 = arith.subf %141, %146 : vector<16x32xf32>
    %148 = arith.mulf %147, %147 : vector<16x32xf32>
    %cst_53 = arith.constant dense<0.000000e+00> : vector<16xf32>
    %149 = vector.multi_reduction <add>, %148, %cst_53 [1] : vector<16x32xf32> to vector<16xf32>
    %150 = vector.shape_cast %149 : vector<16xf32> to vector<16x1xf32>
    %cst_54 = arith.constant 3.200000e+01 : f32
    %151 = vector.broadcast %cst_54 : f32 to vector<16x1xf32>
    %152 = arith.divf %150, %151 : vector<16x1xf32>
    %153 = vector.broadcast %145 : vector<16x1xf32> to vector<16x32xf32>
    %154 = arith.subf %141, %153 : vector<16x32xf32>
    %cst_55 = arith.constant 9.99999974E-6 : f32
    %155 = vector.broadcast %cst_55 : f32 to vector<16x1xf32>
    %156 = arith.addf %152, %155 : vector<16x1xf32>
    %157 = math.rsqrt %156 : vector<16x1xf32>
    %158 = vector.broadcast %157 : vector<16x1xf32> to vector<16x32xf32>
    %159 = arith.mulf %154, %158 : vector<16x32xf32>
    %160 = vector.extract_strided_slice %51 {offsets = [0, 0], sizes = [1, 32], strides = [1, 1]} : vector<1x128xf32> to vector<1x32xf32>
    %161 = vector.broadcast %160 : vector<1x32xf32> to vector<16x32xf32>
    %162 = arith.mulf %159, %161 : vector<16x32xf32>
    %163 = vector.extract_strided_slice %51 {offsets = [0, 32], sizes = [1, 32], strides = [1, 1]} : vector<1x128xf32> to vector<1x32xf32>
    %164 = vector.broadcast %163 : vector<1x32xf32> to vector<16x32xf32>
    %165 = arith.addf %162, %164 : vector<16x32xf32>
    %cst_56 = arith.constant dense<0.000000e+00> : vector<16x128xf32>
    %166 = tpu.matmul %165, %43, %cst_56 {dimension_numbers = #tpu.dot_dimension_numbers<[1], [0], [0], [1], [0, 0, 1, 1], [], []>} : vector<16x32xf32>, vector<32x128xf32>, vector<16x128xf32> -> vector<16x128xf32>
    %167 = vector.broadcast %49 : vector<1x128xf32> to vector<16x128xf32>
    %168 = arith.addf %166, %167 : vector<16x128xf32>
    %cst_57 = arith.constant 0.000000e+00 : f32
    %169 = vector.broadcast %cst_57 : f32 to vector<16x128xf32>
    %170 = arith.maximumf %168, %169 : vector<16x128xf32>
    %cst_58 = arith.constant dense<0.000000e+00> : vector<16x32xf32>
    %171 = tpu.matmul %170, %45, %cst_58 {dimension_numbers = #tpu.dot_dimension_numbers<[1], [1], [0], [0], [0, 0, 1, 0], [], []>} : vector<16x128xf32>, vector<32x128xf32>, vector<16x32xf32> -> vector<16x32xf32>
    %172 = vector.extract_strided_slice %53 {offsets = [0, 32], sizes = [1, 32], strides = [1, 1]} : vector<1x128xf32> to vector<1x32xf32>
    %173 = vector.broadcast %172 : vector<1x32xf32> to vector<16x32xf32>
    %174 = arith.addf %171, %173 : vector<16x32xf32>
    %175 = arith.addf %174, %165 : vector<16x32xf32>
    %cst_59 = arith.constant dense<0.000000e+00> : vector<16xf32>
    %176 = vector.multi_reduction <add>, %175, %cst_59 [1] : vector<16x32xf32> to vector<16xf32>
    %177 = vector.shape_cast %176 : vector<16xf32> to vector<16x1xf32>
    %cst_60 = arith.constant 3.200000e+01 : f32
    %178 = vector.broadcast %cst_60 : f32 to vector<16x1xf32>
    %179 = arith.divf %177, %178 : vector<16x1xf32>
    %180 = vector.broadcast %179 : vector<16x1xf32> to vector<16x32xf32>
    %181 = arith.subf %175, %180 : vector<16x32xf32>
    %182 = arith.mulf %181, %181 : vector<16x32xf32>
    %cst_61 = arith.constant dense<0.000000e+00> : vector<16xf32>
    %183 = vector.multi_reduction <add>, %182, %cst_61 [1] : vector<16x32xf32> to vector<16xf32>
    %184 = vector.shape_cast %183 : vector<16xf32> to vector<16x1xf32>
    %cst_62 = arith.constant 3.200000e+01 : f32
    %185 = vector.broadcast %cst_62 : f32 to vector<16x1xf32>
    %186 = arith.divf %184, %185 : vector<16x1xf32>
    %187 = vector.broadcast %179 : vector<16x1xf32> to vector<16x32xf32>
    %188 = arith.subf %175, %187 : vector<16x32xf32>
    %cst_63 = arith.constant 9.99999974E-6 : f32
    %189 = vector.broadcast %cst_63 : f32 to vector<16x1xf32>
    %190 = arith.addf %186, %189 : vector<16x1xf32>
    %191 = math.rsqrt %190 : vector<16x1xf32>
    %192 = vector.broadcast %191 : vector<16x1xf32> to vector<16x32xf32>
    %193 = arith.mulf %188, %192 : vector<16x32xf32>
    %194 = vector.extract_strided_slice %51 {offsets = [0, 64], sizes = [1, 32], strides = [1, 1]} : vector<1x128xf32> to vector<1x32xf32>
    %195 = vector.broadcast %194 : vector<1x32xf32> to vector<16x32xf32>
    %196 = arith.mulf %193, %195 : vector<16x32xf32>
    %197 = vector.extract_strided_slice %51 {offsets = [0, 96], sizes = [1, 32], strides = [1, 1]} : vector<1x128xf32> to vector<1x32xf32>
    %198 = vector.broadcast %197 : vector<1x32xf32> to vector<16x32xf32>
    %199 = arith.addf %196, %198 : vector<16x32xf32>
    %c1 = arith.constant 1 : index
    %c0_64 = arith.constant 0 : index
    %c0_65 = arith.constant 0 : index
    %200 = vector.load %arg2[%c1, %c0_64, %c0_65] : memref<2x100x128xf32, #tpu.memory_space<vmem>>, vector<1x32x128xf32>
    %201 = vector.shape_cast %200 : vector<1x32x128xf32> to vector<32x128xf32>
    %c1_66 = arith.constant 1 : index
    %c32_67 = arith.constant 32 : index
    %c0_68 = arith.constant 0 : index
    %202 = vector.load %arg2[%c1_66, %c32_67, %c0_68] : memref<2x100x128xf32, #tpu.memory_space<vmem>>, vector<1x32x128xf32>
    %203 = vector.shape_cast %202 : vector<1x32x128xf32> to vector<32x128xf32>
    %c1_69 = arith.constant 1 : index
    %c64_70 = arith.constant 64 : index
    %c0_71 = arith.constant 0 : index
    %204 = vector.load %arg2[%c1_69, %c64_70, %c0_71] : memref<2x100x128xf32, #tpu.memory_space<vmem>>, vector<1x32x128xf32>
    %205 = vector.shape_cast %204 : vector<1x32x128xf32> to vector<32x128xf32>
    %c1_72 = arith.constant 1 : index
    %c96_73 = arith.constant 96 : index
    %c0_74 = arith.constant 0 : index
    %206 = vector.load %arg2[%c1_72, %c96_73, %c0_74] : memref<2x100x128xf32, #tpu.memory_space<vmem>>, vector<1x1x128xf32>
    %207 = vector.shape_cast %206 : vector<1x1x128xf32> to vector<1x128xf32>
    %c1_75 = arith.constant 1 : index
    %c97_76 = arith.constant 97 : index
    %c0_77 = arith.constant 0 : index
    %208 = vector.load %arg2[%c1_75, %c97_76, %c0_77] : memref<2x100x128xf32, #tpu.memory_space<vmem>>, vector<1x1x128xf32>
    %209 = vector.shape_cast %208 : vector<1x1x128xf32> to vector<1x128xf32>
    %c1_78 = arith.constant 1 : index
    %c98_79 = arith.constant 98 : index
    %c0_80 = arith.constant 0 : index
    %210 = vector.load %arg2[%c1_78, %c98_79, %c0_80] : memref<2x100x128xf32, #tpu.memory_space<vmem>>, vector<1x1x128xf32>
    %211 = vector.shape_cast %210 : vector<1x1x128xf32> to vector<1x128xf32>
    %c1_81 = arith.constant 1 : index
    %c99_82 = arith.constant 99 : index
    %c0_83 = arith.constant 0 : index
    %212 = vector.load %arg2[%c1_81, %c99_82, %c0_83] : memref<2x100x128xf32, #tpu.memory_space<vmem>>, vector<1x1x128xf32>
    %213 = vector.shape_cast %212 : vector<1x1x128xf32> to vector<1x128xf32>
    %cst_84 = arith.constant dense<0.000000e+00> : vector<16x128xf32>
    %214 = tpu.matmul %199, %201, %cst_84 {dimension_numbers = #tpu.dot_dimension_numbers<[1], [0], [0], [1], [0, 0, 1, 1], [], []>} : vector<16x32xf32>, vector<32x128xf32>, vector<16x128xf32> -> vector<16x128xf32>
    %215 = vector.broadcast %207 : vector<1x128xf32> to vector<16x128xf32>
    %216 = arith.addf %214, %215 : vector<16x128xf32>
    %cst_85 = arith.constant dense<0.000000e+00> : vector<16x128xf32>
    %217 = tpu.matmul %1, %201, %cst_85 {dimension_numbers = #tpu.dot_dimension_numbers<[1], [0], [0], [1], [0, 0, 1, 1], [], []>} : vector<16x32xf32>, vector<32x128xf32>, vector<16x128xf32> -> vector<16x128xf32>
    %218 = vector.broadcast %207 : vector<1x128xf32> to vector<16x128xf32>
    %219 = arith.addf %217, %218 : vector<16x128xf32>
    %220 = vector.extract_strided_slice %201 {offsets = [0, 96], sizes = [32, 32], strides = [1, 1]} : vector<32x128xf32> to vector<32x32xf32>
    %cst_86 = arith.constant 0.000000e+00 : f32
    %221 = vector.broadcast %cst_86 : f32 to vector<16x32xf32>
    %222 = vector.extract_strided_slice %216 {offsets = [0, 0], sizes = [16, 8], strides = [1, 1]} : vector<16x128xf32> to vector<16x8xf32>
    %223 = vector.extract_strided_slice %219 {offsets = [0, 32], sizes = [16, 8], strides = [1, 1]} : vector<16x128xf32> to vector<16x8xf32>
    %224 = vector.extract_strided_slice %219 {offsets = [0, 64], sizes = [16, 8], strides = [1, 1]} : vector<16x128xf32> to vector<16x8xf32>
    %cst_87 = arith.constant dense<0.000000e+00> : vector<16x16xf32>
    %225 = tpu.matmul %222, %223, %cst_87 {dimension_numbers = #tpu.dot_dimension_numbers<[1], [1], [0], [0], [0, 0, 1, 0], [], []>} : vector<16x8xf32>, vector<16x8xf32>, vector<16x16xf32> -> vector<16x16xf32>
    %226 = arith.addf %225, %39 : vector<16x16xf32>
    %cst_88 = arith.constant dense<0xFF800000> : vector<16xf32>
    %227 = vector.multi_reduction <maximumf>, %226, %cst_88 [1] : vector<16x16xf32> to vector<16xf32>
    %228 = vector.shape_cast %227 : vector<16xf32> to vector<16x1xf32>
    %229 = vector.broadcast %228 : vector<16x1xf32> to vector<16x16xf32>
    %230 = arith.subf %226, %229 : vector<16x16xf32>
    %231 = math.exp %230 : vector<16x16xf32>
    %cst_89 = arith.constant dense<0.000000e+00> : vector<16xf32>
    %232 = vector.multi_reduction <add>, %231, %cst_89 [1] : vector<16x16xf32> to vector<16xf32>
    %233 = vector.shape_cast %232 : vector<16xf32> to vector<16x1xf32>
    %234 = tpu.reciprocal %233 {approx = true} : vector<16x1xf32> -> vector<16x1xf32>
    %235 = vector.broadcast %234 : vector<16x1xf32> to vector<16x16xf32>
    %236 = arith.mulf %231, %235 : vector<16x16xf32>
    %cst_90 = arith.constant dense<0.000000e+00> : vector<16x8xf32>
    %237 = tpu.matmul %236, %224, %cst_90 {dimension_numbers = #tpu.dot_dimension_numbers<[1], [0], [0], [1], [0, 0, 1, 1], [], []>} : vector<16x16xf32>, vector<16x8xf32>, vector<16x8xf32> -> vector<16x8xf32>
    %238 = vector.extract_strided_slice %220 {offsets = [0, 0], sizes = [8, 32], strides = [1, 1]} : vector<32x32xf32> to vector<8x32xf32>
    %cst_91 = arith.constant dense<0.000000e+00> : vector<16x32xf32>
    %239 = tpu.matmul %237, %238, %cst_91 {dimension_numbers = #tpu.dot_dimension_numbers<[1], [0], [0], [1], [0, 0, 1, 1], [], []>} : vector<16x8xf32>, vector<8x32xf32>, vector<16x32xf32> -> vector<16x32xf32>
    %240 = arith.addf %221, %239 : vector<16x32xf32>
    %241 = vector.extract_strided_slice %216 {offsets = [0, 8], sizes = [16, 8], strides = [1, 1]} : vector<16x128xf32> to vector<16x8xf32>
    %242 = vector.extract_strided_slice %219 {offsets = [0, 40], sizes = [16, 8], strides = [1, 1]} : vector<16x128xf32> to vector<16x8xf32>
    %243 = vector.extract_strided_slice %219 {offsets = [0, 72], sizes = [16, 8], strides = [1, 1]} : vector<16x128xf32> to vector<16x8xf32>
    %cst_92 = arith.constant dense<0.000000e+00> : vector<16x16xf32>
    %244 = tpu.matmul %241, %242, %cst_92 {dimension_numbers = #tpu.dot_dimension_numbers<[1], [1], [0], [0], [0, 0, 1, 0], [], []>} : vector<16x8xf32>, vector<16x8xf32>, vector<16x16xf32> -> vector<16x16xf32>
    %245 = arith.addf %244, %39 : vector<16x16xf32>
    %cst_93 = arith.constant dense<0xFF800000> : vector<16xf32>
    %246 = vector.multi_reduction <maximumf>, %245, %cst_93 [1] : vector<16x16xf32> to vector<16xf32>
    %247 = vector.shape_cast %246 : vector<16xf32> to vector<16x1xf32>
    %248 = vector.broadcast %247 : vector<16x1xf32> to vector<16x16xf32>
    %249 = arith.subf %245, %248 : vector<16x16xf32>
    %250 = math.exp %249 : vector<16x16xf32>
    %cst_94 = arith.constant dense<0.000000e+00> : vector<16xf32>
    %251 = vector.multi_reduction <add>, %250, %cst_94 [1] : vector<16x16xf32> to vector<16xf32>
    %252 = vector.shape_cast %251 : vector<16xf32> to vector<16x1xf32>
    %253 = tpu.reciprocal %252 {approx = true} : vector<16x1xf32> -> vector<16x1xf32>
    %254 = vector.broadcast %253 : vector<16x1xf32> to vector<16x16xf32>
    %255 = arith.mulf %250, %254 : vector<16x16xf32>
    %cst_95 = arith.constant dense<0.000000e+00> : vector<16x8xf32>
    %256 = tpu.matmul %255, %243, %cst_95 {dimension_numbers = #tpu.dot_dimension_numbers<[1], [0], [0], [1], [0, 0, 1, 1], [], []>} : vector<16x16xf32>, vector<16x8xf32>, vector<16x8xf32> -> vector<16x8xf32>
    %257 = vector.extract_strided_slice %220 {offsets = [8, 0], sizes = [8, 32], strides = [1, 1]} : vector<32x32xf32> to vector<8x32xf32>
    %cst_96 = arith.constant dense<0.000000e+00> : vector<16x32xf32>
    %258 = tpu.matmul %256, %257, %cst_96 {dimension_numbers = #tpu.dot_dimension_numbers<[1], [0], [0], [1], [0, 0, 1, 1], [], []>} : vector<16x8xf32>, vector<8x32xf32>, vector<16x32xf32> -> vector<16x32xf32>
    %259 = arith.addf %240, %258 : vector<16x32xf32>
    %260 = vector.extract_strided_slice %216 {offsets = [0, 16], sizes = [16, 8], strides = [1, 1]} : vector<16x128xf32> to vector<16x8xf32>
    %261 = vector.extract_strided_slice %219 {offsets = [0, 48], sizes = [16, 8], strides = [1, 1]} : vector<16x128xf32> to vector<16x8xf32>
    %262 = vector.extract_strided_slice %219 {offsets = [0, 80], sizes = [16, 8], strides = [1, 1]} : vector<16x128xf32> to vector<16x8xf32>
    %cst_97 = arith.constant dense<0.000000e+00> : vector<16x16xf32>
    %263 = tpu.matmul %260, %261, %cst_97 {dimension_numbers = #tpu.dot_dimension_numbers<[1], [1], [0], [0], [0, 0, 1, 0], [], []>} : vector<16x8xf32>, vector<16x8xf32>, vector<16x16xf32> -> vector<16x16xf32>
    %264 = arith.addf %263, %39 : vector<16x16xf32>
    %cst_98 = arith.constant dense<0xFF800000> : vector<16xf32>
    %265 = vector.multi_reduction <maximumf>, %264, %cst_98 [1] : vector<16x16xf32> to vector<16xf32>
    %266 = vector.shape_cast %265 : vector<16xf32> to vector<16x1xf32>
    %267 = vector.broadcast %266 : vector<16x1xf32> to vector<16x16xf32>
    %268 = arith.subf %264, %267 : vector<16x16xf32>
    %269 = math.exp %268 : vector<16x16xf32>
    %cst_99 = arith.constant dense<0.000000e+00> : vector<16xf32>
    %270 = vector.multi_reduction <add>, %269, %cst_99 [1] : vector<16x16xf32> to vector<16xf32>
    %271 = vector.shape_cast %270 : vector<16xf32> to vector<16x1xf32>
    %272 = tpu.reciprocal %271 {approx = true} : vector<16x1xf32> -> vector<16x1xf32>
    %273 = vector.broadcast %272 : vector<16x1xf32> to vector<16x16xf32>
    %274 = arith.mulf %269, %273 : vector<16x16xf32>
    %cst_100 = arith.constant dense<0.000000e+00> : vector<16x8xf32>
    %275 = tpu.matmul %274, %262, %cst_100 {dimension_numbers = #tpu.dot_dimension_numbers<[1], [0], [0], [1], [0, 0, 1, 1], [], []>} : vector<16x16xf32>, vector<16x8xf32>, vector<16x8xf32> -> vector<16x8xf32>
    %276 = vector.extract_strided_slice %220 {offsets = [16, 0], sizes = [8, 32], strides = [1, 1]} : vector<32x32xf32> to vector<8x32xf32>
    %cst_101 = arith.constant dense<0.000000e+00> : vector<16x32xf32>
    %277 = tpu.matmul %275, %276, %cst_101 {dimension_numbers = #tpu.dot_dimension_numbers<[1], [0], [0], [1], [0, 0, 1, 1], [], []>} : vector<16x8xf32>, vector<8x32xf32>, vector<16x32xf32> -> vector<16x32xf32>
    %278 = arith.addf %259, %277 : vector<16x32xf32>
    %279 = vector.extract_strided_slice %216 {offsets = [0, 24], sizes = [16, 8], strides = [1, 1]} : vector<16x128xf32> to vector<16x8xf32>
    %280 = vector.extract_strided_slice %219 {offsets = [0, 56], sizes = [16, 8], strides = [1, 1]} : vector<16x128xf32> to vector<16x8xf32>
    %281 = vector.extract_strided_slice %219 {offsets = [0, 88], sizes = [16, 8], strides = [1, 1]} : vector<16x128xf32> to vector<16x8xf32>
    %cst_102 = arith.constant dense<0.000000e+00> : vector<16x16xf32>
    %282 = tpu.matmul %279, %280, %cst_102 {dimension_numbers = #tpu.dot_dimension_numbers<[1], [1], [0], [0], [0, 0, 1, 0], [], []>} : vector<16x8xf32>, vector<16x8xf32>, vector<16x16xf32> -> vector<16x16xf32>
    %283 = arith.addf %282, %39 : vector<16x16xf32>
    %cst_103 = arith.constant dense<0xFF800000> : vector<16xf32>
    %284 = vector.multi_reduction <maximumf>, %283, %cst_103 [1] : vector<16x16xf32> to vector<16xf32>
    %285 = vector.shape_cast %284 : vector<16xf32> to vector<16x1xf32>
    %286 = vector.broadcast %285 : vector<16x1xf32> to vector<16x16xf32>
    %287 = arith.subf %283, %286 : vector<16x16xf32>
    %288 = math.exp %287 : vector<16x16xf32>
    %cst_104 = arith.constant dense<0.000000e+00> : vector<16xf32>
    %289 = vector.multi_reduction <add>, %288, %cst_104 [1] : vector<16x16xf32> to vector<16xf32>
    %290 = vector.shape_cast %289 : vector<16xf32> to vector<16x1xf32>
    %291 = tpu.reciprocal %290 {approx = true} : vector<16x1xf32> -> vector<16x1xf32>
    %292 = vector.broadcast %291 : vector<16x1xf32> to vector<16x16xf32>
    %293 = arith.mulf %288, %292 : vector<16x16xf32>
    %cst_105 = arith.constant dense<0.000000e+00> : vector<16x8xf32>
    %294 = tpu.matmul %293, %281, %cst_105 {dimension_numbers = #tpu.dot_dimension_numbers<[1], [0], [0], [1], [0, 0, 1, 1], [], []>} : vector<16x16xf32>, vector<16x8xf32>, vector<16x8xf32> -> vector<16x8xf32>
    %295 = vector.extract_strided_slice %220 {offsets = [24, 0], sizes = [8, 32], strides = [1, 1]} : vector<32x32xf32> to vector<8x32xf32>
    %cst_106 = arith.constant dense<0.000000e+00> : vector<16x32xf32>
    %296 = tpu.matmul %294, %295, %cst_106 {dimension_numbers = #tpu.dot_dimension_numbers<[1], [0], [0], [1], [0, 0, 1, 1], [], []>} : vector<16x8xf32>, vector<8x32xf32>, vector<16x32xf32> -> vector<16x32xf32>
    %297 = arith.addf %278, %296 : vector<16x32xf32>
    %298 = vector.extract_strided_slice %213 {offsets = [0, 0], sizes = [1, 32], strides = [1, 1]} : vector<1x128xf32> to vector<1x32xf32>
    %299 = vector.broadcast %298 : vector<1x32xf32> to vector<16x32xf32>
    %300 = arith.addf %297, %299 : vector<16x32xf32>
    %301 = arith.addf %300, %199 : vector<16x32xf32>
    %cst_107 = arith.constant dense<0.000000e+00> : vector<16xf32>
    %302 = vector.multi_reduction <add>, %301, %cst_107 [1] : vector<16x32xf32> to vector<16xf32>
    %303 = vector.shape_cast %302 : vector<16xf32> to vector<16x1xf32>
    %cst_108 = arith.constant 3.200000e+01 : f32
    %304 = vector.broadcast %cst_108 : f32 to vector<16x1xf32>
    %305 = arith.divf %303, %304 : vector<16x1xf32>
    %306 = vector.broadcast %305 : vector<16x1xf32> to vector<16x32xf32>
    %307 = arith.subf %301, %306 : vector<16x32xf32>
    %308 = arith.mulf %307, %307 : vector<16x32xf32>
    %cst_109 = arith.constant dense<0.000000e+00> : vector<16xf32>
    %309 = vector.multi_reduction <add>, %308, %cst_109 [1] : vector<16x32xf32> to vector<16xf32>
    %310 = vector.shape_cast %309 : vector<16xf32> to vector<16x1xf32>
    %cst_110 = arith.constant 3.200000e+01 : f32
    %311 = vector.broadcast %cst_110 : f32 to vector<16x1xf32>
    %312 = arith.divf %310, %311 : vector<16x1xf32>
    %313 = vector.broadcast %305 : vector<16x1xf32> to vector<16x32xf32>
    %314 = arith.subf %301, %313 : vector<16x32xf32>
    %cst_111 = arith.constant 9.99999974E-6 : f32
    %315 = vector.broadcast %cst_111 : f32 to vector<16x1xf32>
    %316 = arith.addf %312, %315 : vector<16x1xf32>
    %317 = math.rsqrt %316 : vector<16x1xf32>
    %318 = vector.broadcast %317 : vector<16x1xf32> to vector<16x32xf32>
    %319 = arith.mulf %314, %318 : vector<16x32xf32>
    %320 = vector.extract_strided_slice %211 {offsets = [0, 0], sizes = [1, 32], strides = [1, 1]} : vector<1x128xf32> to vector<1x32xf32>
    %321 = vector.broadcast %320 : vector<1x32xf32> to vector<16x32xf32>
    %322 = arith.mulf %319, %321 : vector<16x32xf32>
    %323 = vector.extract_strided_slice %211 {offsets = [0, 32], sizes = [1, 32], strides = [1, 1]} : vector<1x128xf32> to vector<1x32xf32>
    %324 = vector.broadcast %323 : vector<1x32xf32> to vector<16x32xf32>
    %325 = arith.addf %322, %324 : vector<16x32xf32>
    %cst_112 = arith.constant dense<0.000000e+00> : vector<16x128xf32>
    %326 = tpu.matmul %325, %203, %cst_112 {dimension_numbers = #tpu.dot_dimension_numbers<[1], [0], [0], [1], [0, 0, 1, 1], [], []>} : vector<16x32xf32>, vector<32x128xf32>, vector<16x128xf32> -> vector<16x128xf32>
    %327 = vector.broadcast %209 : vector<1x128xf32> to vector<16x128xf32>
    %328 = arith.addf %326, %327 : vector<16x128xf32>
    %cst_113 = arith.constant 0.000000e+00 : f32
    %329 = vector.broadcast %cst_113 : f32 to vector<16x128xf32>
    %330 = arith.maximumf %328, %329 : vector<16x128xf32>
    %cst_114 = arith.constant dense<0.000000e+00> : vector<16x32xf32>
    %331 = tpu.matmul %330, %205, %cst_114 {dimension_numbers = #tpu.dot_dimension_numbers<[1], [1], [0], [0], [0, 0, 1, 0], [], []>} : vector<16x128xf32>, vector<32x128xf32>, vector<16x32xf32> -> vector<16x32xf32>
    %332 = vector.extract_strided_slice %213 {offsets = [0, 32], sizes = [1, 32], strides = [1, 1]} : vector<1x128xf32> to vector<1x32xf32>
    %333 = vector.broadcast %332 : vector<1x32xf32> to vector<16x32xf32>
    %334 = arith.addf %331, %333 : vector<16x32xf32>
    %335 = arith.addf %334, %325 : vector<16x32xf32>
    %cst_115 = arith.constant dense<0.000000e+00> : vector<16xf32>
    %336 = vector.multi_reduction <add>, %335, %cst_115 [1] : vector<16x32xf32> to vector<16xf32>
    %337 = vector.shape_cast %336 : vector<16xf32> to vector<16x1xf32>
    %cst_116 = arith.constant 3.200000e+01 : f32
    %338 = vector.broadcast %cst_116 : f32 to vector<16x1xf32>
    %339 = arith.divf %337, %338 : vector<16x1xf32>
    %340 = vector.broadcast %339 : vector<16x1xf32> to vector<16x32xf32>
    %341 = arith.subf %335, %340 : vector<16x32xf32>
    %342 = arith.mulf %341, %341 : vector<16x32xf32>
    %cst_117 = arith.constant dense<0.000000e+00> : vector<16xf32>
    %343 = vector.multi_reduction <add>, %342, %cst_117 [1] : vector<16x32xf32> to vector<16xf32>
    %344 = vector.shape_cast %343 : vector<16xf32> to vector<16x1xf32>
    %cst_118 = arith.constant 3.200000e+01 : f32
    %345 = vector.broadcast %cst_118 : f32 to vector<16x1xf32>
    %346 = arith.divf %344, %345 : vector<16x1xf32>
    %347 = vector.broadcast %339 : vector<16x1xf32> to vector<16x32xf32>
    %348 = arith.subf %335, %347 : vector<16x32xf32>
    %cst_119 = arith.constant 9.99999974E-6 : f32
    %349 = vector.broadcast %cst_119 : f32 to vector<16x1xf32>
    %350 = arith.addf %346, %349 : vector<16x1xf32>
    %351 = math.rsqrt %350 : vector<16x1xf32>
    %352 = vector.broadcast %351 : vector<16x1xf32> to vector<16x32xf32>
    %353 = arith.mulf %348, %352 : vector<16x32xf32>
    %354 = vector.extract_strided_slice %211 {offsets = [0, 64], sizes = [1, 32], strides = [1, 1]} : vector<1x128xf32> to vector<1x32xf32>
    %355 = vector.broadcast %354 : vector<1x32xf32> to vector<16x32xf32>
    %356 = arith.mulf %353, %355 : vector<16x32xf32>
    %357 = vector.extract_strided_slice %211 {offsets = [0, 96], sizes = [1, 32], strides = [1, 1]} : vector<1x128xf32> to vector<1x32xf32>
    %358 = vector.broadcast %357 : vector<1x32xf32> to vector<16x32xf32>
    %359 = arith.addf %356, %358 : vector<16x32xf32>
    %c0_120 = arith.constant 0 : index
    %c0_121 = arith.constant 0 : index
    %360 = vector.load %arg3[%c0_120, %c0_121] : memref<16x32xf32, #tpu.memory_space<vmem>>, vector<16x32xf32>
    tpu.vector_store %arg3[%c0_120, %c0_121], %359 {strides = array<i32>} : memref<16x32xf32, #tpu.memory_space<vmem>>, vector<16x32xf32>,
    return
  }
}

</mosaic_0001>

<llo_original>
// kernel: decoder_forward.1
$region0: #{decoder_forward.1}
  #allocation0 [shape = 'u32[]', space=smem, size = 0x4, offset = 0x4, fixed_abs, tag = 'smem constant byte address 0x4 - core index']
  #allocation1 [shape = 'u32[72,128]{1,0:T(1,128)}', space=vmem, size = 0x9000, scoped, tag = 'internal scratch']
  %s0 = inlined_call_operand.vmem [shape: f32[16,32], index: 0, kind: input, shape index: {}]
  %s1 = inlined_call_operand.vmem [shape: f32[16,32], index: 1, kind: input, shape index: {}]
  %s2 = inlined_call_operand.vmem [shape: f32[2,100,128], index: 2, kind: input, shape index: {}]
  %s3 = inlined_call_operand.hbm [shape: f32[16,32], index: 3, kind: output, shape index: {}]
  %s4 = sld [smem:[#allocation0]]
  $region22: #{decoder_forward.1} parent=0
    _
  %s6 = ssub.s32 1, %s4
  %s7 = scalar_select 0, %s6, %s4
  $region1: #{decoder_forward.1} parent=0
    #allocation2 [shape = 'u8[8192]{0}', space=vmem, size = 0x2000, scoped, tag = 'output window, operand 0, single buffered']
    #allocation3 [shape = 's32[1]{0}', space=sflag, size = 0x4, scoped, tag = 'scoped memory for decoder_forward.1']
    %8 = vsyncpa [#allocation3], 0
    // Predicated region
    $region2: #{decoder_forward.1} parent=1 // pred_check
      _
    $region3: #{decoder_forward.1} parent=1 // pred_check_branch
      %10 = sbr.rel (0) target = $region5
    $region4: #{decoder_forward.1} parent=1 // pred_region
      _
    $region5: #{decoder_forward.1} parent=1 // pred_fallthru
      _
    // Predicated region
    $region6: #{decoder_forward.1} parent=1 // pred_check
      _
    $region7: #{decoder_forward.1} parent=1 // pred_check_branch
      %12 = sbr.rel (0) target = $region9
    $region8: #{decoder_forward.1} parent=1 // pred_region
      _
    $region9: #{decoder_forward.1} parent=1 // pred_fallthru
      _
    // Predicated region
    $region10: #{decoder_forward.1} parent=1 // pred_check
      _
    $region11: #{decoder_forward.1} parent=1 // pred_check_branch
      %14 = sbr.rel (0) target = $region13
    $region12: #{decoder_forward.1} parent=1 // pred_region
      _
    $region13: #{decoder_forward.1} parent=1 // pred_fallthru
      _
    %v15 = vld [vmem:[%s0] sm:$0xff]
    %v16 = vld [vmem:[%s0 + $0x8] sm:$0xff]
    %v17 = vld [vmem:[%s1] sm:$0xff]
    %v18 = vld [vmem:[%s1 + $0x8] sm:$0xff]
    %v19 = vlaneseq
    %v20 = vshrl.u32 %v19, 7
    %v21 = vadd.s32 %v20, 8
    %vm22 = vcmp.lt.s32.totalorder %v20, 0
    %v23 = vsub.s32 0, %v20
    %v24 = vsel %vm22, %v23, %v20
    %v25 = vshrl.u32 %v24, 1
    %v26 = vand.u32 %v24, 1
    %v27 = vsub.s32 0, %v26
    %v28 = vsel %vm22, %v27, %v26
    %vm29 = vcmp.lt.s32.totalorder %v21, 0
    %v30 = vsub.s32 0, %v21
    %v31 = vsel %vm29, %v30, %v21
    %v32 = vshrl.u32 %v31, 1
    %v33 = vand.u32 %v31, 1
    %v34 = vsub.s32 0, %v33
    %v35 = vsel %vm29, %v34, %v33
    %vm36 = vcmp.ne.s32.totalorder %v28, 0
    %vm37 = vcmp.ne.s32.totalorder %v35, 0
    %vm38 = vcmp.lt.s32.totalorder %v28, 0
    %vm39 = vcmp.lt.s32.totalorder %v35, 0
    %vm40 = vmand %vm38, %vm36
    %vm41 = vmand %vm39, %vm37
    %v42 = vadd.s32 %v28, 2
    %v43 = vadd.s32 %v35, 2
    %v44 = vsel %vm40, %v42, %v28
    %v45 = vsel %vm41, %v43, %v35
    %v46 = vlaneseq
    %v47 = vand.u32 %v46, 127
    %vm48 = vcmp.lt.s32.totalorder %v47, 0
    %v49 = vsub.s32 0, %v47
    %v50 = vsel %vm48, %v49, %v47
    %v51 = vshrl.u32 %v50, 1
    %v52 = vand.u32 %v50, 1
    %v53 = vsub.s32 0, %v52
    %v54 = vsel %vm48, %v53, %v52
    %vm55 = vcmp.ne.s32.totalorder %v54, 0
    %vm56 = vcmp.lt.s32.totalorder %v54, 0
    %vm57 = vmand %vm56, %vm55
    %v58 = vadd.s32 %v54, 2
    %v59 = vsel %vm57, %v58, %v54
    %vm60 = vcmp.eq.s32.totalorder %v44, %v59
    %vm61 = vcmp.eq.s32.totalorder %v45, %v59
    %v62 = vsel %vm60, 0.0, -1e+30
    %v63 = vsel %vm61, 0.0, -1e+30
    %v64 = vld [vmem:[%s2] sm:$0xff]
    %v65 = vld [vmem:[%s2 + $0x8] sm:$0xff]
    %v66 = vld [vmem:[%s2 + $0x10] sm:$0xff]
    %v67 = vld [vmem:[%s2 + $0x18] sm:$0xff]
    %v68 = vld [vmem:[%s2 + $0x20] sm:$0xff]
    %v69 = vld [vmem:[%s2 + $0x28] sm:$0xff]
    %v70 = vld [vmem:[%s2 + $0x30] sm:$0xff]
    %v71 = vld [vmem:[%s2 + $0x38] sm:$0xff]
    %v72 = vld [vmem:[%s2 + $0x40] sm:$0xff]
    %v73 = vld [vmem:[%s2 + $0x48] sm:$0xff]
    %v74 = vld [vmem:[%s2 + $0x50] sm:$0xff]
    %v75 = vld [vmem:[%s2 + $0x58] sm:$0xff]
    %v76 = vld [vmem:[%s2 + $0x60] sm:$0x1]
    %v77 = vld [vmem:[%s2 + $0x61] sm:$0x1]
    %v78 = vld [vmem:[%s2 + $0x62] sm:$0x1]
    %v79 = vld [vmem:[%s2 + $0x63] sm:$0x1]
    %v80 = vperm.slane %v76, 0
    %vm81 = vcmask 261120
    %v83 = vsel %vm81, %v15, 0
    %v86 = vsel %vm81, %v16, 0
    %88 = vmatpush.msra.mxu0 0.0
    %89 = vmatpush.msra.mxu0 0.0
    %90 = vmatpush.msra.mxu0 0.0
    %91 = vmatpush.msra.mxu0 0.0
    %92 = vmatpush.msra.mxu0 0.0
    %93 = vmatpush.msra.mxu0 0.0
    %94 = vmatpush.msra.mxu0 0.0
    %95 = vmatpush.msra.mxu0 0.0
    %96 = vmatpush.msra.mxu0 0.0
    %97 = vmatpush.msra.mxu0 0.0
    %98 = vmatpush.msra.mxu0 0.0
    %99 = vmatpush.msra.mxu0 0.0
    %100 = vmatpush.msra.mxu0 %v67
    %101 = vmatpush.msra.mxu0 %v66
    %102 = vmatpush.msra.mxu0 %v65
    %103 = vmatpush.msra.mxu0 %v64
    %104 = vmatmul.f32.gmra.mxu0 %v83
    %v105 = vpop.f32.mrf.mxu0
    %v106 = vadd.f32 %v80, %v105
    %107 = vmatmul.f32.gmra.mxu0 %v86
    %v108 = vpop.f32.mrf.mxu0
    %v109 = vadd.f32 %v80, %v108
    %110 = vdwg.mxu0
    %v112 = vsel %vm81, %v17, 0
    %v115 = vsel %vm81, %v18, 0
    %117 = vmatpush.msra.mxu0 0.0
    %118 = vmatpush.msra.mxu0 0.0
    %119 = vmatpush.msra.mxu0 0.0
    %120 = vmatpush.msra.mxu0 0.0
    %121 = vmatpush.msra.mxu0 0.0
    %122 = vmatpush.msra.mxu0 0.0
    %123 = vmatpush.msra.mxu0 0.0
    %124 = vmatpush.msra.mxu0 0.0
    %125 = vmatpush.msra.mxu0 0.0
    %126 = vmatpush.msra.mxu0 0.0
    %127 = vmatpush.msra.mxu0 0.0
    %128 = vmatpush.msra.mxu0 0.0
    %129 = vmatpush.msra.mxu0 %v67
    %130 = vmatpush.msra.mxu0 %v66
    %131 = vmatpush.msra.mxu0 %v65
    %132 = vmatpush.msra.mxu0 %v64
    %133 = vmatmul.f32.gmra.mxu0 %v112
    %v134 = vpop.f32.mrf.mxu0
    %v135 = vadd.f32 %v80, %v134
    %136 = vmatmul.f32.gmra.mxu0 %v115
    %v137 = vpop.f32.mrf.mxu0
    %v138 = vadd.f32 %v80, %v137
    %139 = vdwg.mxu0
    %142 = vrot.lane.b32.xlu0 %v135, 96
    %v143 = vpop.permute.xlu0 %142
    %144 = vrot.lane.b32.xlu0 %v138, 96
    %v145 = vpop.permute.xlu0 %144
    %vm146 = vcmask 64512
    %v148 = vsel %vm146, %v106, 0
    %v151 = vsel %vm146, %v109, 0
    %v153 = vsel %vm146, %v143, 0
    %v155 = vsel %vm146, %v145, 0
    %157 = vmatpush.xpose.msra.mxu0 0.0
    %158 = vmatpush.xpose.msra.mxu0 0.0
    %159 = vmatpush.xpose.msra.mxu0 0.0
    %160 = vmatpush.xpose.msra.mxu0 0.0
    %161 = vmatpush.xpose.msra.mxu0 0.0
    %162 = vmatpush.xpose.msra.mxu0 0.0
    %163 = vmatpush.xpose.msra.mxu0 0.0
    %164 = vmatpush.xpose.msra.mxu0 0.0
    %165 = vmatpush.xpose.msra.mxu0 0.0
    %166 = vmatpush.xpose.msra.mxu0 0.0
    %167 = vmatpush.xpose.msra.mxu0 0.0
    %168 = vmatpush.xpose.msra.mxu0 0.0
    %169 = vmatpush.xpose.msra.mxu0 0.0
    %170 = vmatpush.xpose.msra.mxu0 0.0
    %171 = vmatpush.xpose.msra.mxu0 %v155
    %172 = vmatpush.xpose.msra.mxu0 %v153
    %173 = vmatmul.f32.gmra.mxu0 %v148
    %v174 = vpop.f32.mrf.mxu0
    %v175 = vadd.f32 %v62, %v174
    %176 = vmatmul.f32.gmra.mxu0 %v151
    %v177 = vpop.f32.mrf.mxu0
    %v178 = vadd.f32 %v63, %v177
    %179 = vdwg.mxu0
    %vm180 = vcmask 130048
    %v181 = vsel %vm180, %v175, -inf
    %182 = vmax.xlane.f32.xlu0 %v181
    %v183 = vpop.xlane.xlu0 %182
    %v184 = vsel %vm180, %v178, -inf
    %185 = vmax.xlane.f32.xlu0 %v184
    %v186 = vpop.xlane.xlu0 %185
    %v187 = vsub.f32 %v175, %v183
    %v188 = vsub.f32 %v178, %v186
    %v189 = vmul.f32 %v187, 1.442695
    %v190 = vpow.pop %v189
    %v191 = vmul.f32 %v188, 1.442695
    %v192 = vpow.pop %v191
    %v193 = vsel %vm180, %v190, 0.0
    %194 = vadd.xlane.f32.xlu0 %v193
    %v195 = vpop.xlane.xlu0 %194
    %v196 = vsel %vm180, %v192, 0.0
    %197 = vadd.xlane.f32.xlu0 %v196
    %v198 = vpop.xlane.xlu0 %197
    %v199 = vrcp.pop %v195
    %v200 = vrcp.pop %v198
    %v201 = vmul.f32 %v190, %v199
    %v202 = vmul.f32 %v192, %v200
    %203 = vrot.lane.b32.xlu0 %v135, 64
    %v204 = vpop.permute.xlu0 %203
    %205 = vrot.lane.b32.xlu0 %v138, 64
    %v206 = vpop.permute.xlu0 %205
    %v210 = vsel %vm180, %v201, 0
    %v213 = vsel %vm180, %v202, 0
    %215 = vmatpush.msra.mxu0 0.0
    %216 = vmatpush.msra.mxu0 0.0
    %217 = vmatpush.msra.mxu0 0.0
    %218 = vmatpush.msra.mxu0 0.0
    %219 = vmatpush.msra.mxu0 0.0
    %220 = vmatpush.msra.mxu0 0.0
    %221 = vmatpush.msra.mxu0 0.0
    %222 = vmatpush.msra.mxu0 0.0
    %223 = vmatpush.msra.mxu0 0.0
    %224 = vmatpush.msra.mxu0 0.0
    %225 = vmatpush.msra.mxu0 0.0
    %226 = vmatpush.msra.mxu0 0.0
    %227 = vmatpush.msra.mxu0 0.0
    %228 = vmatpush.msra.mxu0 0.0
    %229 = vmatpush.msra.mxu0 %v206
    %230 = vmatpush.msra.mxu0 %v204
    %231 = vmatmul.f32.gmra.mxu0 %v210
    %v232 = vpop.f32.mrf.mxu0
    %v233 = vadd.f32 0.0, %v232
    %234 = vmatmul.f32.gmra.mxu0 %v213
    %v235 = vpop.f32.mrf.mxu0
    %v236 = vadd.f32 0.0, %v235
    %237 = vdwg.mxu0
    %238 = vrot.lane.b32.xlu0 %v106, 120
    %v239 = vpop.permute.xlu0 %238
    %240 = vrot.lane.b32.xlu0 %v109, 120
    %v241 = vpop.permute.xlu0 %240
    %242 = vrot.lane.b32.xlu0 %v135, 88
    %v243 = vpop.permute.xlu0 %242
    %244 = vrot.lane.b32.xlu0 %v138, 88
    %v245 = vpop.permute.xlu0 %244
    %v246 = vsel %vm146, %v239, 0
    %v248 = vsel %vm146, %v241, 0
    %v250 = vsel %vm146, %v243, 0
    %v252 = vsel %vm146, %v245, 0
    %254 = vmatpush.xpose.msra.mxu0 0.0
    %255 = vmatpush.xpose.msra.mxu0 0.0
    %256 = vmatpush.xpose.msra.mxu0 0.0
    %257 = vmatpush.xpose.msra.mxu0 0.0
    %258 = vmatpush.xpose.msra.mxu0 0.0
    %259 = vmatpush.xpose.msra.mxu0 0.0
    %260 = vmatpush.xpose.msra.mxu0 0.0
    %261 = vmatpush.xpose.msra.mxu0 0.0
    %262 = vmatpush.xpose.msra.mxu0 0.0
    %263 = vmatpush.xpose.msra.mxu0 0.0
    %264 = vmatpush.xpose.msra.mxu0 0.0
    %265 = vmatpush.xpose.msra.mxu0 0.0
    %266 = vmatpush.xpose.msra.mxu0 0.0
    %267 = vmatpush.xpose.msra.mxu0 0.0
    %268 = vmatpush.xpose.msra.mxu0 %v252
    %269 = vmatpush.xpose.msra.mxu0 %v250
    %270 = vmatmul.f32.gmra.mxu0 %v246
    %v271 = vpop.f32.mrf.mxu0
    %v272 = vadd.f32 %v62, %v271
    %273 = vmatmul.f32.gmra.mxu0 %v248
    %v274 = vpop.f32.mrf.mxu0
    %v275 = vadd.f32 %v63, %v274
    %276 = vdwg.mxu0
    %v277 = vsel %vm180, %v272, -inf
    %278 = vmax.xlane.f32.xlu0 %v277
    %v279 = vpop.xlane.xlu0 %278
    %v280 = vsel %vm180, %v275, -inf
    %281 = vmax.xlane.f32.xlu0 %v280
    %v282 = vpop.xlane.xlu0 %281
    %v283 = vsub.f32 %v272, %v279
    %v284 = vsub.f32 %v275, %v282
    %v285 = vmul.f32 %v283, 1.442695
    %v286 = vpow.pop %v285
    %v287 = vmul.f32 %v284, 1.442695
    %v288 = vpow.pop %v287
    %v289 = vsel %vm180, %v286, 0.0
    %290 = vadd.xlane.f32.xlu0 %v289
    %v291 = vpop.xlane.xlu0 %290
    %v292 = vsel %vm180, %v288, 0.0
    %293 = vadd.xlane.f32.xlu0 %v292
    %v294 = vpop.xlane.xlu0 %293
    %v295 = vrcp.pop %v291
    %v296 = vrcp.pop %v294
    %v297 = vmul.f32 %v286, %v295
    %v298 = vmul.f32 %v288, %v296
    %299 = vrot.lane.b32.xlu0 %v135, 56
    %v300 = vpop.permute.xlu0 %299
    %301 = vrot.lane.b32.xlu0 %v138, 56
    %v302 = vpop.permute.xlu0 %301
    %v306 = vsel %vm180, %v297, 0
    %v309 = vsel %vm180, %v298, 0
    %311 = vmatpush.msra.mxu0 0.0
    %312 = vmatpush.msra.mxu0 0.0
    %313 = vmatpush.msra.mxu0 0.0
    %314 = vmatpush.msra.mxu0 0.0
    %315 = vmatpush.msra.mxu0 0.0
    %316 = vmatpush.msra.mxu0 0.0
    %317 = vmatpush.msra.mxu0 0.0
    %318 = vmatpush.msra.mxu0 0.0
    %319 = vmatpush.msra.mxu0 0.0
    %320 = vmatpush.msra.mxu0 0.0
    %321 = vmatpush.msra.mxu0 0.0
    %322 = vmatpush.msra.mxu0 0.0
    %323 = vmatpush.msra.mxu0 0.0
    %324 = vmatpush.msra.mxu0 0.0
    %325 = vmatpush.msra.mxu0 %v302
    %326 = vmatpush.msra.mxu0 %v300
    %327 = vmatmul.f32.gmra.mxu0 %v306
    %v328 = vpop.f32.mrf.mxu0
    %v329 = vadd.f32 0.0, %v328
    %330 = vmatmul.f32.gmra.mxu0 %v309
    %v331 = vpop.f32.mrf.mxu0
    %v332 = vadd.f32 0.0, %v331
    %333 = vdwg.mxu0
    %335 = vrot.lane.b32.xlu0 %v65, 32
    %v336 = vpop.permute.xlu0 %335
    %v339 = vsel %vm146, %v329, 0
    %v342 = vsel %vm146, %v332, 0
    %344 = vmatpush.msra.mxu0 0.0
    %345 = vmatpush.msra.mxu0 0.0
    %346 = vmatpush.msra.mxu0 0.0
    %347 = vmatpush.msra.mxu0 0.0
    %348 = vmatpush.msra.mxu0 0.0
    %349 = vmatpush.msra.mxu0 0.0
    %350 = vmatpush.msra.mxu0 0.0
    %351 = vmatpush.msra.mxu0 0.0
    %352 = vmatpush.msra.mxu0 0.0
    %353 = vmatpush.msra.mxu0 0.0
    %354 = vmatpush.msra.mxu0 0.0
    %355 = vmatpush.msra.mxu0 0.0
    %356 = vmatpush.msra.mxu0 0.0
    %357 = vmatpush.msra.mxu0 0.0
    %358 = vmatpush.msra.mxu0 0.0
    %359 = vmatpush.msra.mxu0 %v336
    %360 = vmatmul.f32.gmra.mxu0 %v339
    %v361 = vpop.f32.mrf.mxu0
    %v362 = vadd.f32 0.0, %v361
    %363 = vmatmul.f32.gmra.mxu0 %v342
    %v364 = vpop.f32.mrf.mxu0
    %v365 = vadd.f32 0.0, %v364
    %366 = vdwg.mxu0
    %368 = vrot.lane.b32.xlu0 %v64, 32
    %v369 = vpop.permute.xlu0 %368
    %v372 = vsel %vm146, %v233, 0
    %v375 = vsel %vm146, %v236, 0
    %377 = vmatpush.msra.mxu0 0.0
    %378 = vmatpush.msra.mxu0 0.0
    %379 = vmatpush.msra.mxu0 0.0
    %380 = vmatpush.msra.mxu0 0.0
    %381 = vmatpush.msra.mxu0 0.0
    %382 = vmatpush.msra.mxu0 0.0
    %383 = vmatpush.msra.mxu0 0.0
    %384 = vmatpush.msra.mxu0 0.0
    %385 = vmatpush.msra.mxu0 0.0
    %386 = vmatpush.msra.mxu0 0.0
    %387 = vmatpush.msra.mxu0 0.0
    %388 = vmatpush.msra.mxu0 0.0
    %389 = vmatpush.msra.mxu0 0.0
    %390 = vmatpush.msra.mxu0 0.0
    %391 = vmatpush.msra.mxu0 0.0
    %392 = vmatpush.msra.mxu0 %v369
    %393 = vmatmul.f32.gmra.mxu0 %v372
    %v394 = vpop.f32.mrf.mxu0
    %v395 = vadd.f32 %v362, %v394
    %396 = vmatmul.f32.gmra.mxu0 %v375
    %v397 = vpop.f32.mrf.mxu0
    %v398 = vadd.f32 %v365, %v397
    %399 = vdwg.mxu0
    %400 = vrot.lane.b32.xlu0 %v106, 112
    %v401 = vpop.permute.xlu0 %400
    %402 = vrot.lane.b32.xlu0 %v109, 112
    %v403 = vpop.permute.xlu0 %402
    %404 = vrot.lane.b32.xlu0 %v135, 80
    %v405 = vpop.permute.xlu0 %404
    %406 = vrot.lane.b32.xlu0 %v138, 80
    %v407 = vpop.permute.xlu0 %406
    %v408 = vsel %vm146, %v401, 0
    %v410 = vsel %vm146, %v403, 0
    %v412 = vsel %vm146, %v405, 0
    %v414 = vsel %vm146, %v407, 0
    %416 = vmatpush.xpose.msra.mxu0 0.0
    %417 = vmatpush.xpose.msra.mxu0 0.0
    %418 = vmatpush.xpose.msra.mxu0 0.0
    %419 = vmatpush.xpose.msra.mxu0 0.0
    %420 = vmatpush.xpose.msra.mxu0 0.0
    %421 = vmatpush.xpose.msra.mxu0 0.0
    %422 = vmatpush.xpose.msra.mxu0 0.0
    %423 = vmatpush.xpose.msra.mxu0 0.0
    %424 = vmatpush.xpose.msra.mxu0 0.0
    %425 = vmatpush.xpose.msra.mxu0 0.0
    %426 = vmatpush.xpose.msra.mxu0 0.0
    %427 = vmatpush.xpose.msra.mxu0 0.0
    %428 = vmatpush.xpose.msra.mxu0 0.0
    %429 = vmatpush.xpose.msra.mxu0 0.0
    %430 = vmatpush.xpose.msra.mxu0 %v414
    %431 = vmatpush.xpose.msra.mxu0 %v412
    %432 = vmatmul.f32.gmra.mxu0 %v408
    %v433 = vpop.f32.mrf.mxu0
    %v434 = vadd.f32 %v62, %v433
    %435 = vmatmul.f32.gmra.mxu0 %v410
    %v436 = vpop.f32.mrf.mxu0
    %v437 = vadd.f32 %v63, %v436
    %438 = vdwg.mxu0
    %v439 = vsel %vm180, %v434, -inf
    %440 = vmax.xlane.f32.xlu0 %v439
    %v441 = vpop.xlane.xlu0 %440
    %v442 = vsel %vm180, %v437, -inf
    %443 = vmax.xlane.f32.xlu0 %v442
    %v444 = vpop.xlane.xlu0 %443
    %v445 = vsub.f32 %v434, %v441
    %v446 = vsub.f32 %v437, %v444
    %v447 = vmul.f32 %v445, 1.442695
    %v448 = vpow.pop %v447
    %v449 = vmul.f32 %v446, 1.442695
    %v450 = vpow.pop %v449
    %v451 = vsel %vm180, %v448, 0.0
    %452 = vadd.xlane.f32.xlu0 %v451
    %v453 = vpop.xlane.xlu0 %452
    %v454 = vsel %vm180, %v450, 0.0
    %455 = vadd.xlane.f32.xlu0 %v454
    %v456 = vpop.xlane.xlu0 %455
    %v457 = vrcp.pop %v453
    %v458 = vrcp.pop %v456
    %v459 = vmul.f32 %v448, %v457
    %v460 = vmul.f32 %v450, %v458
    %461 = vrot.lane.b32.xlu0 %v135, 48
    %v462 = vpop.permute.xlu0 %461
    %463 = vrot.lane.b32.xlu0 %v138, 48
    %v464 = vpop.permute.xlu0 %463
    %v468 = vsel %vm180, %v459, 0
    %v471 = vsel %vm180, %v460, 0
    %473 = vmatpush.msra.mxu0 0.0
    %474 = vmatpush.msra.mxu0 0.0
    %475 = vmatpush.msra.mxu0 0.0
    %476 = vmatpush.msra.mxu0 0.0
    %477 = vmatpush.msra.mxu0 0.0
    %478 = vmatpush.msra.mxu0 0.0
    %479 = vmatpush.msra.mxu0 0.0
    %480 = vmatpush.msra.mxu0 0.0
    %481 = vmatpush.msra.mxu0 0.0
    %482 = vmatpush.msra.mxu0 0.0
    %483 = vmatpush.msra.mxu0 0.0
    %484 = vmatpush.msra.mxu0 0.0
    %485 = vmatpush.msra.mxu0 0.0
    %486 = vmatpush.msra.mxu0 0.0
    %487 = vmatpush.msra.mxu0 %v464
    %488 = vmatpush.msra.mxu0 %v462
    %489 = vmatmul.f32.gmra.mxu0 %v468
    %v490 = vpop.f32.mrf.mxu0
    %v491 = vadd.f32 0.0, %v490
    %492 = vmatmul.f32.gmra.mxu0 %v471
    %v493 = vpop.f32.mrf.mxu0
    %v494 = vadd.f32 0.0, %v493
    %495 = vdwg.mxu0
    %497 = vrot.lane.b32.xlu0 %v66, 32
    %v498 = vpop.permute.xlu0 %497
    %v501 = vsel %vm146, %v491, 0
    %v504 = vsel %vm146, %v494, 0
    %506 = vmatpush.msra.mxu0 0.0
    %507 = vmatpush.msra.mxu0 0.0
    %508 = vmatpush.msra.mxu0 0.0
    %509 = vmatpush.msra.mxu0 0.0
    %510 = vmatpush.msra.mxu0 0.0
    %511 = vmatpush.msra.mxu0 0.0
    %512 = vmatpush.msra.mxu0 0.0
    %513 = vmatpush.msra.mxu0 0.0
    %514 = vmatpush.msra.mxu0 0.0
    %515 = vmatpush.msra.mxu0 0.0
    %516 = vmatpush.msra.mxu0 0.0
    %517 = vmatpush.msra.mxu0 0.0
    %518 = vmatpush.msra.mxu0 0.0
    %519 = vmatpush.msra.mxu0 0.0
    %520 = vmatpush.msra.mxu0 0.0
    %521 = vmatpush.msra.mxu0 %v498
    %522 = vmatmul.f32.gmra.mxu0 %v501
    %v523 = vpop.f32.mrf.mxu0
    %v524 = vadd.f32 0.0, %v523
    %525 = vmatmul.f32.gmra.mxu0 %v504
    %v526 = vpop.f32.mrf.mxu0
    %v527 = vadd.f32 0.0, %v526
    %528 = vdwg.mxu0
    %v529 = vadd.f32 %v395, %v524
    %v530 = vadd.f32 %v398, %v527
    %531 = vrot.lane.b32.xlu0 %v106, 104
    %v532 = vpop.permute.xlu0 %531
    %533 = vrot.lane.b32.xlu0 %v109, 104
    %v534 = vpop.permute.xlu0 %533
    %535 = vrot.lane.b32.xlu0 %v135, 72
    %v536 = vpop.permute.xlu0 %535
    %537 = vrot.lane.b32.xlu0 %v138, 72
    %v538 = vpop.permute.xlu0 %537
    %v539 = vsel %vm146, %v532, 0
    %v541 = vsel %vm146, %v534, 0
    %v543 = vsel %vm146, %v536, 0
    %v545 = vsel %vm146, %v538, 0
    %547 = vmatpush.xpose.msra.mxu0 0.0
    %548 = vmatpush.xpose.msra.mxu0 0.0
    %549 = vmatpush.xpose.msra.mxu0 0.0
    %550 = vmatpush.xpose.msra.mxu0 0.0
    %551 = vmatpush.xpose.msra.mxu0 0.0
    %552 = vmatpush.xpose.msra.mxu0 0.0
    %553 = vmatpush.xpose.msra.mxu0 0.0
    %554 = vmatpush.xpose.msra.mxu0 0.0
    %555 = vmatpush.xpose.msra.mxu0 0.0
    %556 = vmatpush.xpose.msra.mxu0 0.0
    %557 = vmatpush.xpose.msra.mxu0 0.0
    %558 = vmatpush.xpose.msra.mxu0 0.0
    %559 = vmatpush.xpose.msra.mxu0 0.0
    %560 = vmatpush.xpose.msra.mxu0 0.0
    %561 = vmatpush.xpose.msra.mxu0 %v545
    %562 = vmatpush.xpose.msra.mxu0 %v543
    %563 = vmatmul.f32.gmra.mxu0 %v539
    %v564 = vpop.f32.mrf.mxu0
    %v565 = vadd.f32 %v62, %v564
    %566 = vmatmul.f32.gmra.mxu0 %v541
    %v567 = vpop.f32.mrf.mxu0
    %v568 = vadd.f32 %v63, %v567
    %569 = vdwg.mxu0
    %v570 = vsel %vm180, %v565, -inf
    %571 = vmax.xlane.f32.xlu0 %v570
    %v572 = vpop.xlane.xlu0 %571
    %v573 = vsel %vm180, %v568, -inf
    %574 = vmax.xlane.f32.xlu0 %v573
    %v575 = vpop.xlane.xlu0 %574
    %v576 = vsub.f32 %v565, %v572
    %v577 = vsub.f32 %v568, %v575
    %v578 = vmul.f32 %v576, 1.442695
    %v579 = vpow.pop %v578
    %v580 = vmul.f32 %v577, 1.442695
    %v581 = vpow.pop %v580
    %v582 = vsel %vm180, %v579, 0.0
    %583 = vadd.xlane.f32.xlu0 %v582
    %v584 = vpop.xlane.xlu0 %583
    %v585 = vsel %vm180, %v581, 0.0
    %586 = vadd.xlane.f32.xlu0 %v585
    %v587 = vpop.xlane.xlu0 %586
    %v588 = vrcp.pop %v584
    %v589 = vrcp.pop %v587
    %v590 = vmul.f32 %v579, %v588
    %v591 = vmul.f32 %v581, %v589
    %592 = vrot.lane.b32.xlu0 %v135, 40
    %v593 = vpop.permute.xlu0 %592
    %594 = vrot.lane.b32.xlu0 %v138, 40
    %v595 = vpop.permute.xlu0 %594
    %v599 = vsel %vm180, %v590, 0
    %v602 = vsel %vm180, %v591, 0
    %604 = vmatpush.msra.mxu0 0.0
    %605 = vmatpush.msra.mxu0 0.0
    %606 = vmatpush.msra.mxu0 0.0
    %607 = vmatpush.msra.mxu0 0.0
    %608 = vmatpush.msra.mxu0 0.0
    %609 = vmatpush.msra.mxu0 0.0
    %610 = vmatpush.msra.mxu0 0.0
    %611 = vmatpush.msra.mxu0 0.0
    %612 = vmatpush.msra.mxu0 0.0
    %613 = vmatpush.msra.mxu0 0.0
    %614 = vmatpush.msra.mxu0 0.0
    %615 = vmatpush.msra.mxu0 0.0
    %616 = vmatpush.msra.mxu0 0.0
    %617 = vmatpush.msra.mxu0 0.0
    %618 = vmatpush.msra.mxu0 %v595
    %619 = vmatpush.msra.mxu0 %v593
    %620 = vmatmul.f32.gmra.mxu0 %v599
    %v621 = vpop.f32.mrf.mxu0
    %v622 = vadd.f32 0.0, %v621
    %623 = vmatmul.f32.gmra.mxu0 %v602
    %v624 = vpop.f32.mrf.mxu0
    %v625 = vadd.f32 0.0, %v624
    %626 = vdwg.mxu0
    %628 = vrot.lane.b32.xlu0 %v67, 32
    %v629 = vpop.permute.xlu0 %628
    %v632 = vsel %vm146, %v622, 0
    %v635 = vsel %vm146, %v625, 0
    %637 = vmatpush.msra.mxu0 0.0
    %638 = vmatpush.msra.mxu0 0.0
    %639 = vmatpush.msra.mxu0 0.0
    %640 = vmatpush.msra.mxu0 0.0
    %641 = vmatpush.msra.mxu0 0.0
    %642 = vmatpush.msra.mxu0 0.0
    %643 = vmatpush.msra.mxu0 0.0
    %644 = vmatpush.msra.mxu0 0.0
    %645 = vmatpush.msra.mxu0 0.0
    %646 = vmatpush.msra.mxu0 0.0
    %647 = vmatpush.msra.mxu0 0.0
    %648 = vmatpush.msra.mxu0 0.0
    %649 = vmatpush.msra.mxu0 0.0
    %650 = vmatpush.msra.mxu0 0.0
    %651 = vmatpush.msra.mxu0 0.0
    %652 = vmatpush.msra.mxu0 %v629
    %653 = vmatmul.f32.gmra.mxu0 %v632
    %v654 = vpop.f32.mrf.mxu0
    %v655 = vadd.f32 0.0, %v654
    %656 = vmatmul.f32.gmra.mxu0 %v635
    %v657 = vpop.f32.mrf.mxu0
    %v658 = vadd.f32 0.0, %v657
    %659 = vdwg.mxu0
    %v660 = vadd.f32 %v529, %v655
    %v661 = vadd.f32 %v530, %v658
    %v662 = vperm.slane %v79, 0
    %v663 = vadd.f32 %v660, %v662
    %v664 = vadd.f32 %v661, %v662
    %v665 = vadd.f32 %v663, %v15
    %v666 = vadd.f32 %v664, %v16
    %v667 = vsel %vm81, %v665, 0.0
    %668 = vadd.xlane.f32.xlu0 %v667
    %v669 = vpop.xlane.xlu0 %668
    %v670 = vsel %vm81, %v666, 0.0
    %671 = vadd.xlane.f32.xlu0 %v670
    %v672 = vpop.xlane.xlu0 %671
    %v673 = vrcp.pop 32.0
    %v674 = vmul.f32 32.0, %v673
    %v675 = vsub.f32 1.0, %v674
    %v676 = vmul.f32 %v673, %v675
    %v677 = vadd.f32 %v673, %v676
    %vm678 = vweird.f32 %v673
    %v679 = vsel %vm678, %v673, %v677
    %v680 = vmul.f32 %v669, %v679
    %v681 = vmul.f32 %v672, %v679
    %v682 = vsub.f32 %v665, %v680
    %v683 = vsub.f32 %v666, %v681
    %v684 = vmul.f32 %v682, %v682
    %v685 = vmul.f32 %v683, %v683
    %v686 = vsel %vm81, %v684, 0.0
    %687 = vadd.xlane.f32.xlu0 %v686
    %v688 = vpop.xlane.xlu0 %687
    %v689 = vsel %vm81, %v685, 0.0
    %690 = vadd.xlane.f32.xlu0 %v689
    %v691 = vpop.xlane.xlu0 %690
    %v692 = vmul.f32 %v688, %v679
    %v693 = vmul.f32 %v691, %v679
    %v694 = vadd.f32 %v692, 1e-05
    %v695 = vadd.f32 %v693, 1e-05
    %v696 = vrsqrt.pop %v694
    %v697 = vmul.f32 %v696, %v694
    %v698 = vmul.f32 %v697, %v696
    %v699 = vmul.f32 0.5, %v698
    %v700 = vsub.f32 1.5, %v699
    %v701 = vmul.f32 %v696, %v700
    %vm702 = vweird.f32 %v694
    %vm703 = vweird.f32 %v696
    %vm704 = vmor %vm702, %vm703
    %v705 = vsel %vm704, %v696, %v701
    %v706 = vrsqrt.pop %v695
    %v707 = vmul.f32 %v706, %v695
    %v708 = vmul.f32 %v707, %v706
    %v709 = vmul.f32 0.5, %v708
    %v710 = vsub.f32 1.5, %v709
    %v711 = vmul.f32 %v706, %v710
    %vm712 = vweird.f32 %v695
    %vm713 = vweird.f32 %v706
    %vm714 = vmor %vm712, %vm713
    %v715 = vsel %vm714, %v706, %v711
    %v716 = vmul.f32 %v682, %v705
    %v717 = vmul.f32 %v683, %v715
    %v718 = vperm.slane %v78, 0
    %v719 = vmul.f32 %v716, %v718
    %v720 = vmul.f32 %v717, %v718
    %722 = vrot.lane.b32.xlu0 %v718, 96
    %v723 = vpop.permute.xlu0 %722
    %v725 = vadd.f32 %v719, %v723
    %v726 = vadd.f32 %v720, %v723
    %v727 = vperm.slane %v77, 0
    %v729 = vsel %vm81, %v725, 0
    %v732 = vsel %vm81, %v726, 0
    %734 = vmatpush.msra.mxu0 0.0
    %735 = vmatpush.msra.mxu0 0.0
    %736 = vmatpush.msra.mxu0 0.0
    %737 = vmatpush.msra.mxu0 0.0
    %738 = vmatpush.msra.mxu0 0.0
    %739 = vmatpush.msra.mxu0 0.0
    %740 = vmatpush.msra.mxu0 0.0
    %741 = vmatpush.msra.mxu0 0.0
    %742 = vmatpush.msra.mxu0 0.0
    %743 = vmatpush.msra.mxu0 0.0
    %744 = vmatpush.msra.mxu0 0.0
    %745 = vmatpush.msra.mxu0 0.0
    %746 = vmatpush.msra.mxu0 %v71
    %747 = vmatpush.msra.mxu0 %v70
    %748 = vmatpush.msra.mxu0 %v69
    %749 = vmatpush.msra.mxu0 %v68
    %750 = vmatmul.f32.gmra.mxu0 %v729
    %v751 = vpop.f32.mrf.mxu0
    %v752 = vadd.f32 %v727, %v751
    %753 = vmatmul.f32.gmra.mxu0 %v732
    %v754 = vpop.f32.mrf.mxu0
    %v755 = vadd.f32 %v727, %v754
    %756 = vdwg.mxu0
    %v757 = vmax.f32 %v752, 0.0
    %v758 = vmax.f32 %v755, 0.0
    %760 = vrot.lane.b32.xlu0 %v662, 96
    %v761 = vpop.permute.xlu0 %760
    %763 = vmatpush.xpose.msra.mxu0 0.0
    %764 = vmatpush.xpose.msra.mxu0 0.0
    %765 = vmatpush.xpose.msra.mxu0 0.0
    %766 = vmatpush.xpose.msra.mxu0 0.0
    %767 = vmatpush.xpose.msra.mxu0 0.0
    %768 = vmatpush.xpose.msra.mxu0 0.0
    %769 = vmatpush.xpose.msra.mxu0 0.0
    %770 = vmatpush.xpose.msra.mxu0 0.0
    %771 = vmatpush.xpose.msra.mxu0 0.0
    %772 = vmatpush.xpose.msra.mxu0 0.0
    %773 = vmatpush.xpose.msra.mxu0 0.0
    %774 = vmatpush.xpose.msra.mxu0 0.0
    %775 = vmatpush.xpose.msra.mxu0 %v75
    %776 = vmatpush.xpose.msra.mxu0 %v74
    %777 = vmatpush.xpose.msra.mxu0 %v73
    %778 = vmatpush.xpose.msra.mxu0 %v72
    %779 = vmatmul.f32.gmra.mxu0 %v757
    %v780 = vpop.f32.mrf.mxu0
    %v781 = vadd.f32 %v761, %v780
    %782 = vmatmul.f32.gmra.mxu0 %v758
    %v783 = vpop.f32.mrf.mxu0
    %v784 = vadd.f32 %v761, %v783
    %785 = vdwg.mxu0
    %v786 = vadd.f32 %v781, %v725
    %v787 = vadd.f32 %v784, %v726
    %v788 = vsel %vm81, %v786, 0.0
    %789 = vadd.xlane.f32.xlu0 %v788
    %v790 = vpop.xlane.xlu0 %789
    %v791 = vsel %vm81, %v787, 0.0
    %792 = vadd.xlane.f32.xlu0 %v791
    %v793 = vpop.xlane.xlu0 %792
    %v794 = vmul.f32 %v790, %v679
    %v795 = vmul.f32 %v793, %v679
    %v796 = vsub.f32 %v786, %v794
    %v797 = vsub.f32 %v787, %v795
    %v798 = vmul.f32 %v796, %v796
    %v799 = vmul.f32 %v797, %v797
    %v800 = vsel %vm81, %v798, 0.0
    %801 = vadd.xlane.f32.xlu0 %v800
    %v802 = vpop.xlane.xlu0 %801
    %v803 = vsel %vm81, %v799, 0.0
    %804 = vadd.xlane.f32.xlu0 %v803
    %v805 = vpop.xlane.xlu0 %804
    %v806 = vmul.f32 %v802, %v679
    %v807 = vmul.f32 %v805, %v679
    %v808 = vadd.f32 %v806, 1e-05
    %v809 = vadd.f32 %v807, 1e-05
    %v810 = vrsqrt.pop %v808
    %v811 = vmul.f32 %v810, %v808
    %v812 = vmul.f32 %v811, %v810
    %v813 = vmul.f32 0.5, %v812
    %v814 = vsub.f32 1.5, %v813
    %v815 = vmul.f32 %v810, %v814
    %vm816 = vweird.f32 %v808
    %vm817 = vweird.f32 %v810
    %vm818 = vmor %vm816, %vm817
    %v819 = vsel %vm818, %v810, %v815
    %v820 = vrsqrt.pop %v809
    %v821 = vmul.f32 %v820, %v809
    %v822 = vmul.f32 %v821, %v820
    %v823 = vmul.f32 0.5, %v822
    %v824 = vsub.f32 1.5, %v823
    %v825 = vmul.f32 %v820, %v824
    %vm826 = vweird.f32 %v809
    %vm827 = vweird.f32 %v820
    %vm828 = vmor %vm826, %vm827
    %v829 = vsel %vm828, %v820, %v825
    %v830 = vmul.f32 %v796, %v819
    %v831 = vmul.f32 %v797, %v829
    %832 = vrot.lane.b32.xlu0 %v718, 64
    %v833 = vpop.permute.xlu0 %832
    %v835 = vmul.f32 %v830, %v833
    %v836 = vmul.f32 %v831, %v833
    %837 = vrot.lane.b32.xlu0 %v718, 32
    %v838 = vpop.permute.xlu0 %837
    %v840 = vadd.f32 %v835, %v838
    %v841 = vadd.f32 %v836, %v838
    %s842 = scalar_lea.vmem %s2, 104
    %v843 = vld [vmem:[%s842] sm:$0xff]
    %v844 = vld [vmem:[%s842 + $0x8] sm:$0xff]
    %v845 = vld [vmem:[%s842 + $0x10] sm:$0xff]
    %v846 = vld [vmem:[%s842 + $0x18] sm:$0xff]
    %v847 = vld [vmem:[%s842 + $0x20] sm:$0xff]
    %v848 = vld [vmem:[%s842 + $0x28] sm:$0xff]
    %v849 = vld [vmem:[%s842 + $0x30] sm:$0xff]
    %v850 = vld [vmem:[%s842 + $0x38] sm:$0xff]
    %v851 = vld [vmem:[%s842 + $0x40] sm:$0xff]
    %v852 = vld [vmem:[%s842 + $0x48] sm:$0xff]
    %v853 = vld [vmem:[%s842 + $0x50] sm:$0xff]
    %v854 = vld [vmem:[%s842 + $0x58] sm:$0xff]
    %v855 = vld [vmem:[%s842 + $0x60] sm:$0x1]
    %v856 = vld [vmem:[%s842 + $0x61] sm:$0x1]
    %v857 = vld [vmem:[%s842 + $0x62] sm:$0x1]
    %v858 = vld [vmem:[%s842 + $0x63] sm:$0x1]
    %v859 = vperm.slane %v855, 0
    %v861 = vsel %vm81, %v840, 0
    %v864 = vsel %vm81, %v841, 0
    %866 = vmatpush.msra.mxu0 0.0
    %867 = vmatpush.msra.mxu0 0.0
    %868 = vmatpush.msra.mxu0 0.0
    %869 = vmatpush.msra.mxu0 0.0
    %870 = vmatpush.msra.mxu0 0.0
    %871 = vmatpush.msra.mxu0 0.0
    %872 = vmatpush.msra.mxu0 0.0
    %873 = vmatpush.msra.mxu0 0.0
    %874 = vmatpush.msra.mxu0 0.0
    %875 = vmatpush.msra.mxu0 0.0
    %876 = vmatpush.msra.mxu0 0.0
    %877 = vmatpush.msra.mxu0 0.0
    %878 = vmatpush.msra.mxu0 %v846
    %879 = vmatpush.msra.mxu0 %v845
    %880 = vmatpush.msra.mxu0 %v844
    %881 = vmatpush.msra.mxu0 %v843
    %882 = vmatmul.f32.gmra.mxu0 %v861
    %v883 = vpop.f32.mrf.mxu0
    %v884 = vadd.f32 %v859, %v883
    %885 = vmatmul.f32.gmra.mxu0 %v864
    %v886 = vpop.f32.mrf.mxu0
    %v887 = vadd.f32 %v859, %v886
    %888 = vdwg.mxu0
    %889 = vmatpush.msra.mxu0 0.0
    %890 = vmatpush.msra.mxu0 0.0
    %891 = vmatpush.msra.mxu0 0.0
    %892 = vmatpush.msra.mxu0 0.0
    %893 = vmatpush.msra.mxu0 0.0
    %894 = vmatpush.msra.mxu0 0.0
    %895 = vmatpush.msra.mxu0 0.0
    %896 = vmatpush.msra.mxu0 0.0
    %897 = vmatpush.msra.mxu0 0.0
    %898 = vmatpush.msra.mxu0 0.0
    %899 = vmatpush.msra.mxu0 0.0
    %900 = vmatpush.msra.mxu0 0.0
    %901 = vmatpush.msra.mxu0 %v846
    %902 = vmatpush.msra.mxu0 %v845
    %903 = vmatpush.msra.mxu0 %v844
    %904 = vmatpush.msra.mxu0 %v843
    %905 = vmatmul.f32.gmra.mxu0 %v112
    %v906 = vpop.f32.mrf.mxu0
    %v907 = vadd.f32 %v859, %v906
    %908 = vmatmul.f32.gmra.mxu0 %v115
    %v909 = vpop.f32.mrf.mxu0
    %v910 = vadd.f32 %v859, %v909
    %911 = vdwg.mxu0
    %914 = vrot.lane.b32.xlu0 %v907, 96
    %v915 = vpop.permute.xlu0 %914
    %916 = vrot.lane.b32.xlu0 %v910, 96
    %v917 = vpop.permute.xlu0 %916
    %v919 = vsel %vm146, %v884, 0
    %v922 = vsel %vm146, %v887, 0
    %v924 = vsel %vm146, %v915, 0
    %v926 = vsel %vm146, %v917, 0
    %928 = vmatpush.xpose.msra.mxu0 0.0
    %929 = vmatpush.xpose.msra.mxu0 0.0
    %930 = vmatpush.xpose.msra.mxu0 0.0
    %931 = vmatpush.xpose.msra.mxu0 0.0
    %932 = vmatpush.xpose.msra.mxu0 0.0
    %933 = vmatpush.xpose.msra.mxu0 0.0
    %934 = vmatpush.xpose.msra.mxu0 0.0
    %935 = vmatpush.xpose.msra.mxu0 0.0
    %936 = vmatpush.xpose.msra.mxu0 0.0
    %937 = vmatpush.xpose.msra.mxu0 0.0
    %938 = vmatpush.xpose.msra.mxu0 0.0
    %939 = vmatpush.xpose.msra.mxu0 0.0
    %940 = vmatpush.xpose.msra.mxu0 0.0
    %941 = vmatpush.xpose.msra.mxu0 0.0
    %942 = vmatpush.xpose.msra.mxu0 %v926
    %943 = vmatpush.xpose.msra.mxu0 %v924
    %944 = vmatmul.f32.gmra.mxu0 %v919
    %v945 = vpop.f32.mrf.mxu0
    %v946 = vadd.f32 %v62, %v945
    %947 = vmatmul.f32.gmra.mxu0 %v922
    %v948 = vpop.f32.mrf.mxu0
    %v949 = vadd.f32 %v63, %v948
    %950 = vdwg.mxu0
    %v951 = vsel %vm180, %v946, -inf
    %952 = vmax.xlane.f32.xlu0 %v951
    %v953 = vpop.xlane.xlu0 %952
    %v954 = vsel %vm180, %v949, -inf
    %955 = vmax.xlane.f32.xlu0 %v954
    %v956 = vpop.xlane.xlu0 %955
    %v957 = vsub.f32 %v946, %v953
    %v958 = vsub.f32 %v949, %v956
    %v959 = vmul.f32 %v957, 1.442695
    %v960 = vpow.pop %v959
    %v961 = vmul.f32 %v958, 1.442695
    %v962 = vpow.pop %v961
    %v963 = vsel %vm180, %v960, 0.0
    %964 = vadd.xlane.f32.xlu0 %v963
    %v965 = vpop.xlane.xlu0 %964
    %v966 = vsel %vm180, %v962, 0.0
    %967 = vadd.xlane.f32.xlu0 %v966
    %v968 = vpop.xlane.xlu0 %967
    %v969 = vrcp.pop %v965
    %v970 = vrcp.pop %v968
    %v971 = vmul.f32 %v960, %v969
    %v972 = vmul.f32 %v962, %v970
    %973 = vrot.lane.b32.xlu0 %v907, 64
    %v974 = vpop.permute.xlu0 %973
    %975 = vrot.lane.b32.xlu0 %v910, 64
    %v976 = vpop.permute.xlu0 %975
    %v980 = vsel %vm180, %v971, 0
    %v983 = vsel %vm180, %v972, 0
    %985 = vmatpush.msra.mxu0 0.0
    %986 = vmatpush.msra.mxu0 0.0
    %987 = vmatpush.msra.mxu0 0.0
    %988 = vmatpush.msra.mxu0 0.0
    %989 = vmatpush.msra.mxu0 0.0
    %990 = vmatpush.msra.mxu0 0.0
    %991 = vmatpush.msra.mxu0 0.0
    %992 = vmatpush.msra.mxu0 0.0
    %993 = vmatpush.msra.mxu0 0.0
    %994 = vmatpush.msra.mxu0 0.0
    %995 = vmatpush.msra.mxu0 0.0
    %996 = vmatpush.msra.mxu0 0.0
    %997 = vmatpush.msra.mxu0 0.0
    %998 = vmatpush.msra.mxu0 0.0
    %999 = vmatpush.msra.mxu0 %v976
    %1000 = vmatpush.msra.mxu0 %v974
    %1001 = vmatmul.f32.gmra.mxu0 %v980
    %v1002 = vpop.f32.mrf.mxu0
    %v1003 = vadd.f32 0.0, %v1002
    %1004 = vmatmul.f32.gmra.mxu0 %v983
    %v1005 = vpop.f32.mrf.mxu0
    %v1006 = vadd.f32 0.0, %v1005
    %1007 = vdwg.mxu0
    %1008 = vrot.lane.b32.xlu0 %v884, 120
    %v1009 = vpop.permute.xlu0 %1008
    %1010 = vrot.lane.b32.xlu0 %v887, 120
    %v1011 = vpop.permute.xlu0 %1010
    %1012 = vrot.lane.b32.xlu0 %v907, 88
    %v1013 = vpop.permute.xlu0 %1012
    %1014 = vrot.lane.b32.xlu0 %v910, 88
    %v1015 = vpop.permute.xlu0 %1014
    %v1016 = vsel %vm146, %v1009, 0
    %v1018 = vsel %vm146, %v1011, 0
    %v1020 = vsel %vm146, %v1013, 0
    %v1022 = vsel %vm146, %v1015, 0
    %1024 = vmatpush.xpose.msra.mxu0 0.0
    %1025 = vmatpush.xpose.msra.mxu0 0.0
    %1026 = vmatpush.xpose.msra.mxu0 0.0
    %1027 = vmatpush.xpose.msra.mxu0 0.0
    %1028 = vmatpush.xpose.msra.mxu0 0.0
    %1029 = vmatpush.xpose.msra.mxu0 0.0
    %1030 = vmatpush.xpose.msra.mxu0 0.0
    %1031 = vmatpush.xpose.msra.mxu0 0.0
    %1032 = vmatpush.xpose.msra.mxu0 0.0
    %1033 = vmatpush.xpose.msra.mxu0 0.0
    %1034 = vmatpush.xpose.msra.mxu0 0.0
    %1035 = vmatpush.xpose.msra.mxu0 0.0
    %1036 = vmatpush.xpose.msra.mxu0 0.0
    %1037 = vmatpush.xpose.msra.mxu0 0.0
    %1038 = vmatpush.xpose.msra.mxu0 %v1022
    %1039 = vmatpush.xpose.msra.mxu0 %v1020
    %1040 = vmatmul.f32.gmra.mxu0 %v1016
    %v1041 = vpop.f32.mrf.mxu0
    %v1042 = vadd.f32 %v62, %v1041
    %1043 = vmatmul.f32.gmra.mxu0 %v1018
    %v1044 = vpop.f32.mrf.mxu0
    %v1045 = vadd.f32 %v63, %v1044
    %1046 = vdwg.mxu0
    %v1047 = vsel %vm180, %v1042, -inf
    %1048 = vmax.xlane.f32.xlu0 %v1047
    %v1049 = vpop.xlane.xlu0 %1048
    %v1050 = vsel %vm180, %v1045, -inf
    %1051 = vmax.xlane.f32.xlu0 %v1050
    %v1052 = vpop.xlane.xlu0 %1051
    %v1053 = vsub.f32 %v1042, %v1049
    %v1054 = vsub.f32 %v1045, %v1052
    %v1055 = vmul.f32 %v1053, 1.442695
    %v1056 = vpow.pop %v1055
    %v1057 = vmul.f32 %v1054, 1.442695
    %v1058 = vpow.pop %v1057
    %v1059 = vsel %vm180, %v1056, 0.0
    %1060 = vadd.xlane.f32.xlu0 %v1059
    %v1061 = vpop.xlane.xlu0 %1060
    %v1062 = vsel %vm180, %v1058, 0.0
    %1063 = vadd.xlane.f32.xlu0 %v1062
    %v1064 = vpop.xlane.xlu0 %1063
    %v1065 = vrcp.pop %v1061
    %v1066 = vrcp.pop %v1064
    %v1067 = vmul.f32 %v1056, %v1065
    %v1068 = vmul.f32 %v1058, %v1066
    %1069 = vrot.lane.b32.xlu0 %v907, 56
    %v1070 = vpop.permute.xlu0 %1069
    %1071 = vrot.lane.b32.xlu0 %v910, 56
    %v1072 = vpop.permute.xlu0 %1071
    %v1076 = vsel %vm180, %v1067, 0
    %v1079 = vsel %vm180, %v1068, 0
    %1081 = vmatpush.msra.mxu0 0.0
    %1082 = vmatpush.msra.mxu0 0.0
    %1083 = vmatpush.msra.mxu0 0.0
    %1084 = vmatpush.msra.mxu0 0.0
    %1085 = vmatpush.msra.mxu0 0.0
    %1086 = vmatpush.msra.mxu0 0.0
    %1087 = vmatpush.msra.mxu0 0.0
    %1088 = vmatpush.msra.mxu0 0.0
    %1089 = vmatpush.msra.mxu0 0.0
    %1090 = vmatpush.msra.mxu0 0.0
    %1091 = vmatpush.msra.mxu0 0.0
    %1092 = vmatpush.msra.mxu0 0.0
    %1093 = vmatpush.msra.mxu0 0.0
    %1094 = vmatpush.msra.mxu0 0.0
    %1095 = vmatpush.msra.mxu0 %v1072
    %1096 = vmatpush.msra.mxu0 %v1070
    %1097 = vmatmul.f32.gmra.mxu0 %v1076
    %v1098 = vpop.f32.mrf.mxu0
    %v1099 = vadd.f32 0.0, %v1098
    %1100 = vmatmul.f32.gmra.mxu0 %v1079
    %v1101 = vpop.f32.mrf.mxu0
    %v1102 = vadd.f32 0.0, %v1101
    %1103 = vdwg.mxu0
    %1105 = vrot.lane.b32.xlu0 %v844, 32
    %v1106 = vpop.permute.xlu0 %1105
    %v1109 = vsel %vm146, %v1099, 0
    %v1112 = vsel %vm146, %v1102, 0
    %1114 = vmatpush.msra.mxu0 0.0
    %1115 = vmatpush.msra.mxu0 0.0
    %1116 = vmatpush.msra.mxu0 0.0
    %1117 = vmatpush.msra.mxu0 0.0
    %1118 = vmatpush.msra.mxu0 0.0
    %1119 = vmatpush.msra.mxu0 0.0
    %1120 = vmatpush.msra.mxu0 0.0
    %1121 = vmatpush.msra.mxu0 0.0
    %1122 = vmatpush.msra.mxu0 0.0
    %1123 = vmatpush.msra.mxu0 0.0
    %1124 = vmatpush.msra.mxu0 0.0
    %1125 = vmatpush.msra.mxu0 0.0
    %1126 = vmatpush.msra.mxu0 0.0
    %1127 = vmatpush.msra.mxu0 0.0
    %1128 = vmatpush.msra.mxu0 0.0
    %1129 = vmatpush.msra.mxu0 %v1106
    %1130 = vmatmul.f32.gmra.mxu0 %v1109
    %v1131 = vpop.f32.mrf.mxu0
    %v1132 = vadd.f32 0.0, %v1131
    %1133 = vmatmul.f32.gmra.mxu0 %v1112
    %v1134 = vpop.f32.mrf.mxu0
    %v1135 = vadd.f32 0.0, %v1134
    %1136 = vdwg.mxu0
    %1138 = vrot.lane.b32.xlu0 %v843, 32
    %v1139 = vpop.permute.xlu0 %1138
    %v1142 = vsel %vm146, %v1003, 0
    %v1145 = vsel %vm146, %v1006, 0
    %1147 = vmatpush.msra.mxu0 0.0
    %1148 = vmatpush.msra.mxu0 0.0
    %1149 = vmatpush.msra.mxu0 0.0
    %1150 = vmatpush.msra.mxu0 0.0
    %1151 = vmatpush.msra.mxu0 0.0
    %1152 = vmatpush.msra.mxu0 0.0
    %1153 = vmatpush.msra.mxu0 0.0
    %1154 = vmatpush.msra.mxu0 0.0
    %1155 = vmatpush.msra.mxu0 0.0
    %1156 = vmatpush.msra.mxu0 0.0
    %1157 = vmatpush.msra.mxu0 0.0
    %1158 = vmatpush.msra.mxu0 0.0
    %1159 = vmatpush.msra.mxu0 0.0
    %1160 = vmatpush.msra.mxu0 0.0
    %1161 = vmatpush.msra.mxu0 0.0
    %1162 = vmatpush.msra.mxu0 %v1139
    %1163 = vmatmul.f32.gmra.mxu0 %v1142
    %v1164 = vpop.f32.mrf.mxu0
    %v1165 = vadd.f32 %v1132, %v1164
    %1166 = vmatmul.f32.gmra.mxu0 %v1145
    %v1167 = vpop.f32.mrf.mxu0
    %v1168 = vadd.f32 %v1135, %v1167
    %1169 = vdwg.mxu0
    %1170 = vrot.lane.b32.xlu0 %v884, 112
    %v1171 = vpop.permute.xlu0 %1170
    %1172 = vrot.lane.b32.xlu0 %v887, 112
    %v1173 = vpop.permute.xlu0 %1172
    %1174 = vrot.lane.b32.xlu0 %v907, 80
    %v1175 = vpop.permute.xlu0 %1174
    %1176 = vrot.lane.b32.xlu0 %v910, 80
    %v1177 = vpop.permute.xlu0 %1176
    %v1178 = vsel %vm146, %v1171, 0
    %v1180 = vsel %vm146, %v1173, 0
    %v1182 = vsel %vm146, %v1175, 0
    %v1184 = vsel %vm146, %v1177, 0
    %1186 = vmatpush.xpose.msra.mxu0 0.0
    %1187 = vmatpush.xpose.msra.mxu0 0.0
    %1188 = vmatpush.xpose.msra.mxu0 0.0
    %1189 = vmatpush.xpose.msra.mxu0 0.0
    %1190 = vmatpush.xpose.msra.mxu0 0.0
    %1191 = vmatpush.xpose.msra.mxu0 0.0
    %1192 = vmatpush.xpose.msra.mxu0 0.0
    %1193 = vmatpush.xpose.msra.mxu0 0.0
    %1194 = vmatpush.xpose.msra.mxu0 0.0
    %1195 = vmatpush.xpose.msra.mxu0 0.0
    %1196 = vmatpush.xpose.msra.mxu0 0.0
    %1197 = vmatpush.xpose.msra.mxu0 0.0
    %1198 = vmatpush.xpose.msra.mxu0 0.0
    %1199 = vmatpush.xpose.msra.mxu0 0.0
    %1200 = vmatpush.xpose.msra.mxu0 %v1184
    %1201 = vmatpush.xpose.msra.mxu0 %v1182
    %1202 = vmatmul.f32.gmra.mxu0 %v1178
    %v1203 = vpop.f32.mrf.mxu0
    %v1204 = vadd.f32 %v62, %v1203
    %1205 = vmatmul.f32.gmra.mxu0 %v1180
    %v1206 = vpop.f32.mrf.mxu0
    %v1207 = vadd.f32 %v63, %v1206
    %1208 = vdwg.mxu0
    %v1209 = vsel %vm180, %v1204, -inf
    %1210 = vmax.xlane.f32.xlu0 %v1209
    %v1211 = vpop.xlane.xlu0 %1210
    %v1212 = vsel %vm180, %v1207, -inf
    %1213 = vmax.xlane.f32.xlu0 %v1212
    %v1214 = vpop.xlane.xlu0 %1213
    %v1215 = vsub.f32 %v1204, %v1211
    %v1216 = vsub.f32 %v1207, %v1214
    %v1217 = vmul.f32 %v1215, 1.442695
    %v1218 = vpow.pop %v1217
    %v1219 = vmul.f32 %v1216, 1.442695
    %v1220 = vpow.pop %v1219
    %v1221 = vsel %vm180, %v1218, 0.0
    %1222 = vadd.xlane.f32.xlu0 %v1221
    %v1223 = vpop.xlane.xlu0 %1222
    %v1224 = vsel %vm180, %v1220, 0.0
    %1225 = vadd.xlane.f32.xlu0 %v1224
    %v1226 = vpop.xlane.xlu0 %1225
    %v1227 = vrcp.pop %v1223
    %v1228 = vrcp.pop %v1226
    %v1229 = vmul.f32 %v1218, %v1227
    %v1230 = vmul.f32 %v1220, %v1228
    %1231 = vrot.lane.b32.xlu0 %v907, 48
    %v1232 = vpop.permute.xlu0 %1231
    %1233 = vrot.lane.b32.xlu0 %v910, 48
    %v1234 = vpop.permute.xlu0 %1233
    %v1238 = vsel %vm180, %v1229, 0
    %v1241 = vsel %vm180, %v1230, 0
    %1243 = vmatpush.msra.mxu0 0.0
    %1244 = vmatpush.msra.mxu0 0.0
    %1245 = vmatpush.msra.mxu0 0.0
    %1246 = vmatpush.msra.mxu0 0.0
    %1247 = vmatpush.msra.mxu0 0.0
    %1248 = vmatpush.msra.mxu0 0.0
    %1249 = vmatpush.msra.mxu0 0.0
    %1250 = vmatpush.msra.mxu0 0.0
    %1251 = vmatpush.msra.mxu0 0.0
    %1252 = vmatpush.msra.mxu0 0.0
    %1253 = vmatpush.msra.mxu0 0.0
    %1254 = vmatpush.msra.mxu0 0.0
    %1255 = vmatpush.msra.mxu0 0.0
    %1256 = vmatpush.msra.mxu0 0.0
    %1257 = vmatpush.msra.mxu0 %v1234
    %1258 = vmatpush.msra.mxu0 %v1232
    %1259 = vmatmul.f32.gmra.mxu0 %v1238
    %v1260 = vpop.f32.mrf.mxu0
    %v1261 = vadd.f32 0.0, %v1260
    %1262 = vmatmul.f32.gmra.mxu0 %v1241
    %v1263 = vpop.f32.mrf.mxu0
    %v1264 = vadd.f32 0.0, %v1263
    %1265 = vdwg.mxu0
    %1267 = vrot.lane.b32.xlu0 %v845, 32
    %v1268 = vpop.permute.xlu0 %1267
    %v1271 = vsel %vm146, %v1261, 0
    %v1274 = vsel %vm146, %v1264, 0
    %1276 = vmatpush.msra.mxu0 0.0
    %1277 = vmatpush.msra.mxu0 0.0
    %1278 = vmatpush.msra.mxu0 0.0
    %1279 = vmatpush.msra.mxu0 0.0
    %1280 = vmatpush.msra.mxu0 0.0
    %1281 = vmatpush.msra.mxu0 0.0
    %1282 = vmatpush.msra.mxu0 0.0
    %1283 = vmatpush.msra.mxu0 0.0
    %1284 = vmatpush.msra.mxu0 0.0
    %1285 = vmatpush.msra.mxu0 0.0
    %1286 = vmatpush.msra.mxu0 0.0
    %1287 = vmatpush.msra.mxu0 0.0
    %1288 = vmatpush.msra.mxu0 0.0
    %1289 = vmatpush.msra.mxu0 0.0
    %1290 = vmatpush.msra.mxu0 0.0
    %1291 = vmatpush.msra.mxu0 %v1268
    %1292 = vmatmul.f32.gmra.mxu0 %v1271
    %v1293 = vpop.f32.mrf.mxu0
    %v1294 = vadd.f32 0.0, %v1293
    %1295 = vmatmul.f32.gmra.mxu0 %v1274
    %v1296 = vpop.f32.mrf.mxu0
    %v1297 = vadd.f32 0.0, %v1296
    %1298 = vdwg.mxu0
    %v1299 = vadd.f32 %v1165, %v1294
    %v1300 = vadd.f32 %v1168, %v1297
    %1301 = vrot.lane.b32.xlu0 %v884, 104
    %v1302 = vpop.permute.xlu0 %1301
    %1303 = vrot.lane.b32.xlu0 %v887, 104
    %v1304 = vpop.permute.xlu0 %1303
    %1305 = vrot.lane.b32.xlu0 %v907, 72
    %v1306 = vpop.permute.xlu0 %1305
    %1307 = vrot.lane.b32.xlu0 %v910, 72
    %v1308 = vpop.permute.xlu0 %1307
    %v1309 = vsel %vm146, %v1302, 0
    %v1311 = vsel %vm146, %v1304, 0
    %v1313 = vsel %vm146, %v1306, 0
    %v1315 = vsel %vm146, %v1308, 0
    %1317 = vmatpush.xpose.msra.mxu0 0.0
    %1318 = vmatpush.xpose.msra.mxu0 0.0
    %1319 = vmatpush.xpose.msra.mxu0 0.0
    %1320 = vmatpush.xpose.msra.mxu0 0.0
    %1321 = vmatpush.xpose.msra.mxu0 0.0
    %1322 = vmatpush.xpose.msra.mxu0 0.0
    %1323 = vmatpush.xpose.msra.mxu0 0.0
    %1324 = vmatpush.xpose.msra.mxu0 0.0
    %1325 = vmatpush.xpose.msra.mxu0 0.0
    %1326 = vmatpush.xpose.msra.mxu0 0.0
    %1327 = vmatpush.xpose.msra.mxu0 0.0
    %1328 = vmatpush.xpose.msra.mxu0 0.0
    %1329 = vmatpush.xpose.msra.mxu0 0.0
    %1330 = vmatpush.xpose.msra.mxu0 0.0
    %1331 = vmatpush.xpose.msra.mxu0 %v1315
    %1332 = vmatpush.xpose.msra.mxu0 %v1313
    %1333 = vmatmul.f32.gmra.mxu0 %v1309
    %v1334 = vpop.f32.mrf.mxu0
    %v1335 = vadd.f32 %v62, %v1334
    %1336 = vmatmul.f32.gmra.mxu0 %v1311
    %v1337 = vpop.f32.mrf.mxu0
    %v1338 = vadd.f32 %v63, %v1337
    %1339 = vdwg.mxu0
    %v1340 = vsel %vm180, %v1335, -inf
    %1341 = vmax.xlane.f32.xlu0 %v1340
    %v1342 = vpop.xlane.xlu0 %1341
    %v1343 = vsel %vm180, %v1338, -inf
    %1344 = vmax.xlane.f32.xlu0 %v1343
    %v1345 = vpop.xlane.xlu0 %1344
    %v1346 = vsub.f32 %v1335, %v1342
    %v1347 = vsub.f32 %v1338, %v1345
    %v1348 = vmul.f32 %v1346, 1.442695
    %v1349 = vpow.pop %v1348
    %v1350 = vmul.f32 %v1347, 1.442695
    %v1351 = vpow.pop %v1350
    %v1352 = vsel %vm180, %v1349, 0.0
    %1353 = vadd.xlane.f32.xlu0 %v1352
    %v1354 = vpop.xlane.xlu0 %1353
    %v1355 = vsel %vm180, %v1351, 0.0
    %1356 = vadd.xlane.f32.xlu0 %v1355
    %v1357 = vpop.xlane.xlu0 %1356
    %v1358 = vrcp.pop %v1354
    %v1359 = vrcp.pop %v1357
    %v1360 = vmul.f32 %v1349, %v1358
    %v1361 = vmul.f32 %v1351, %v1359
    %1362 = vrot.lane.b32.xlu0 %v907, 40
    %v1363 = vpop.permute.xlu0 %1362
    %1364 = vrot.lane.b32.xlu0 %v910, 40
    %v1365 = vpop.permute.xlu0 %1364
    %v1369 = vsel %vm180, %v1360, 0
    %v1372 = vsel %vm180, %v1361, 0
    %1374 = vmatpush.msra.mxu0 0.0
    %1375 = vmatpush.msra.mxu0 0.0
    %1376 = vmatpush.msra.mxu0 0.0
    %1377 = vmatpush.msra.mxu0 0.0
    %1378 = vmatpush.msra.mxu0 0.0
    %1379 = vmatpush.msra.mxu0 0.0
    %1380 = vmatpush.msra.mxu0 0.0
    %1381 = vmatpush.msra.mxu0 0.0
    %1382 = vmatpush.msra.mxu0 0.0
    %1383 = vmatpush.msra.mxu0 0.0
    %1384 = vmatpush.msra.mxu0 0.0
    %1385 = vmatpush.msra.mxu0 0.0
    %1386 = vmatpush.msra.mxu0 0.0
    %1387 = vmatpush.msra.mxu0 0.0
    %1388 = vmatpush.msra.mxu0 %v1365
    %1389 = vmatpush.msra.mxu0 %v1363
    %1390 = vmatmul.f32.gmra.mxu0 %v1369
    %v1391 = vpop.f32.mrf.mxu0
    %v1392 = vadd.f32 0.0, %v1391
    %1393 = vmatmul.f32.gmra.mxu0 %v1372
    %v1394 = vpop.f32.mrf.mxu0
    %v1395 = vadd.f32 0.0, %v1394
    %1396 = vdwg.mxu0
    %1398 = vrot.lane.b32.xlu0 %v846, 32
    %v1399 = vpop.permute.xlu0 %1398
    %v1402 = vsel %vm146, %v1392, 0
    %v1405 = vsel %vm146, %v1395, 0
    %1407 = vmatpush.msra.mxu0 0.0
    %1408 = vmatpush.msra.mxu0 0.0
    %1409 = vmatpush.msra.mxu0 0.0
    %1410 = vmatpush.msra.mxu0 0.0
    %1411 = vmatpush.msra.mxu0 0.0
    %1412 = vmatpush.msra.mxu0 0.0
    %1413 = vmatpush.msra.mxu0 0.0
    %1414 = vmatpush.msra.mxu0 0.0
    %1415 = vmatpush.msra.mxu0 0.0
    %1416 = vmatpush.msra.mxu0 0.0
    %1417 = vmatpush.msra.mxu0 0.0
    %1418 = vmatpush.msra.mxu0 0.0
    %1419 = vmatpush.msra.mxu0 0.0
    %1420 = vmatpush.msra.mxu0 0.0
    %1421 = vmatpush.msra.mxu0 0.0
    %1422 = vmatpush.msra.mxu0 %v1399
    %1423 = vmatmul.f32.gmra.mxu0 %v1402
    %v1424 = vpop.f32.mrf.mxu0
    %v1425 = vadd.f32 0.0, %v1424
    %1426 = vmatmul.f32.gmra.mxu0 %v1405
    %v1427 = vpop.f32.mrf.mxu0
    %v1428 = vadd.f32 0.0, %v1427
    %1429 = vdwg.mxu0
    %v1430 = vadd.f32 %v1299, %v1425
    %v1431 = vadd.f32 %v1300, %v1428
    %v1432 = vperm.slane %v858, 0
    %v1433 = vadd.f32 %v1430, %v1432
    %v1434 = vadd.f32 %v1431, %v1432
    %v1435 = vadd.f32 %v1433, %v840
    %v1436 = vadd.f32 %v1434, %v841
    %v1437 = vsel %vm81, %v1435, 0.0
    %1438 = vadd.xlane.f32.xlu0 %v1437
    %v1439 = vpop.xlane.xlu0 %1438
    %v1440 = vsel %vm81, %v1436, 0.0
    %1441 = vadd.xlane.f32.xlu0 %v1440
    %v1442 = vpop.xlane.xlu0 %1441
    %v1443 = vmul.f32 %v1439, %v679
    %v1444 = vmul.f32 %v1442, %v679
    %v1445 = vsub.f32 %v1435, %v1443
    %v1446 = vsub.f32 %v1436, %v1444
    %v1447 = vmul.f32 %v1445, %v1445
    %v1448 = vmul.f32 %v1446, %v1446
    %v1449 = vsel %vm81, %v1447, 0.0
    %1450 = vadd.xlane.f32.xlu0 %v1449
    %v1451 = vpop.xlane.xlu0 %1450
    %v1452 = vsel %vm81, %v1448, 0.0
    %1453 = vadd.xlane.f32.xlu0 %v1452
    %v1454 = vpop.xlane.xlu0 %1453
    %v1455 = vmul.f32 %v1451, %v679
    %v1456 = vmul.f32 %v1454, %v679
    %v1457 = vadd.f32 %v1455, 1e-05
    %v1458 = vadd.f32 %v1456, 1e-05
    %v1459 = vrsqrt.pop %v1457
    %v1460 = vmul.f32 %v1459, %v1457
    %v1461 = vmul.f32 %v1460, %v1459
    %v1462 = vmul.f32 0.5, %v1461
    %v1463 = vsub.f32 1.5, %v1462
    %v1464 = vmul.f32 %v1459, %v1463
    %vm1465 = vweird.f32 %v1457
    %vm1466 = vweird.f32 %v1459
    %vm1467 = vmor %vm1465, %vm1466
    %v1468 = vsel %vm1467, %v1459, %v1464
    %v1469 = vrsqrt.pop %v1458
    %v1470 = vmul.f32 %v1469, %v1458
    %v1471 = vmul.f32 %v1470, %v1469
    %v1472 = vmul.f32 0.5, %v1471
    %v1473 = vsub.f32 1.5, %v1472
    %v1474 = vmul.f32 %v1469, %v1473
    %vm1475 = vweird.f32 %v1458
    %vm1476 = vweird.f32 %v1469
    %vm1477 = vmor %vm1475, %vm1476
    %v1478 = vsel %vm1477, %v1469, %v1474
    %v1479 = vmul.f32 %v1445, %v1468
    %v1480 = vmul.f32 %v1446, %v1478
    %v1481 = vperm.slane %v857, 0
    %v1482 = vmul.f32 %v1479, %v1481
    %v1483 = vmul.f32 %v1480, %v1481
    %1485 = vrot.lane.b32.xlu0 %v1481, 96
    %v1486 = vpop.permute.xlu0 %1485
    %v1488 = vadd.f32 %v1482, %v1486
    %v1489 = vadd.f32 %v1483, %v1486
    %v1490 = vperm.slane %v856, 0
    %v1492 = vsel %vm81, %v1488, 0
    %v1495 = vsel %vm81, %v1489, 0
    %1497 = vmatpush.msra.mxu0 0.0
    %1498 = vmatpush.msra.mxu0 0.0
    %1499 = vmatpush.msra.mxu0 0.0
    %1500 = vmatpush.msra.mxu0 0.0
    %1501 = vmatpush.msra.mxu0 0.0
    %1502 = vmatpush.msra.mxu0 0.0
    %1503 = vmatpush.msra.mxu0 0.0
    %1504 = vmatpush.msra.mxu0 0.0
    %1505 = vmatpush.msra.mxu0 0.0
    %1506 = vmatpush.msra.mxu0 0.0
    %1507 = vmatpush.msra.mxu0 0.0
    %1508 = vmatpush.msra.mxu0 0.0
    %1509 = vmatpush.msra.mxu0 %v850
    %1510 = vmatpush.msra.mxu0 %v849
    %1511 = vmatpush.msra.mxu0 %v848
    %1512 = vmatpush.msra.mxu0 %v847
    %1513 = vmatmul.f32.gmra.mxu0 %v1492
    %v1514 = vpop.f32.mrf.mxu0
    %v1515 = vadd.f32 %v1490, %v1514
    %1516 = vmatmul.f32.gmra.mxu0 %v1495
    %v1517 = vpop.f32.mrf.mxu0
    %v1518 = vadd.f32 %v1490, %v1517
    %1519 = vdwg.mxu0
    %v1520 = vmax.f32 %v1515, 0.0
    %v1521 = vmax.f32 %v1518, 0.0
    %1523 = vrot.lane.b32.xlu0 %v1432, 96
    %v1524 = vpop.permute.xlu0 %1523
    %1526 = vmatpush.xpose.msra.mxu0 0.0
    %1527 = vmatpush.xpose.msra.mxu0 0.0
    %1528 = vmatpush.xpose.msra.mxu0 0.0
    %1529 = vmatpush.xpose.msra.mxu0 0.0
    %1530 = vmatpush.xpose.msra.mxu0 0.0
    %1531 = vmatpush.xpose.msra.mxu0 0.0
    %1532 = vmatpush.xpose.msra.mxu0 0.0
    %1533 = vmatpush.xpose.msra.mxu0 0.0
    %1534 = vmatpush.xpose.msra.mxu0 0.0
    %1535 = vmatpush.xpose.msra.mxu0 0.0
    %1536 = vmatpush.xpose.msra.mxu0 0.0
    %1537 = vmatpush.xpose.msra.mxu0 0.0
    %1538 = vmatpush.xpose.msra.mxu0 %v854
    %1539 = vmatpush.xpose.msra.mxu0 %v853
    %1540 = vmatpush.xpose.msra.mxu0 %v852
    %1541 = vmatpush.xpose.msra.mxu0 %v851
    %1542 = vmatmul.f32.gmra.mxu0 %v1520
    %v1543 = vpop.f32.mrf.mxu0
    %v1544 = vadd.f32 %v1524, %v1543
    %1545 = vmatmul.f32.gmra.mxu0 %v1521
    %v1546 = vpop.f32.mrf.mxu0
    %v1547 = vadd.f32 %v1524, %v1546
    %1548 = vdwg.mxu0
    %v1549 = vadd.f32 %v1544, %v1488
    %v1550 = vadd.f32 %v1547, %v1489
    %v1551 = vsel %vm81, %v1549, 0.0
    %1552 = vadd.xlane.f32.xlu0 %v1551
    %v1553 = vpop.xlane.xlu0 %1552
    %v1554 = vsel %vm81, %v1550, 0.0
    %1555 = vadd.xlane.f32.xlu0 %v1554
    %v1556 = vpop.xlane.xlu0 %1555
    %v1557 = vmul.f32 %v1553, %v679
    %v1558 = vmul.f32 %v1556, %v679
    %v1559 = vsub.f32 %v1549, %v1557
    %v1560 = vsub.f32 %v1550, %v1558
    %v1561 = vmul.f32 %v1559, %v1559
    %v1562 = vmul.f32 %v1560, %v1560
    %v1563 = vsel %vm81, %v1561, 0.0
    %1564 = vadd.xlane.f32.xlu0 %v1563
    %v1565 = vpop.xlane.xlu0 %1564
    %v1566 = vsel %vm81, %v1562, 0.0
    %1567 = vadd.xlane.f32.xlu0 %v1566
    %v1568 = vpop.xlane.xlu0 %1567
    %v1569 = vmul.f32 %v1565, %v679
    %v1570 = vmul.f32 %v1568, %v679
    %v1571 = vadd.f32 %v1569, 1e-05
    %v1572 = vadd.f32 %v1570, 1e-05
    %v1573 = vrsqrt.pop %v1571
    %v1574 = vmul.f32 %v1573, %v1571
    %v1575 = vmul.f32 %v1574, %v1573
    %v1576 = vmul.f32 0.5, %v1575
    %v1577 = vsub.f32 1.5, %v1576
    %v1578 = vmul.f32 %v1573, %v1577
    %vm1579 = vweird.f32 %v1571
    %vm1580 = vweird.f32 %v1573
    %vm1581 = vmor %vm1579, %vm1580
    %v1582 = vsel %vm1581, %v1573, %v1578
    %v1583 = vrsqrt.pop %v1572
    %v1584 = vmul.f32 %v1583, %v1572
    %v1585 = vmul.f32 %v1584, %v1583
    %v1586 = vmul.f32 0.5, %v1585
    %v1587 = vsub.f32 1.5, %v1586
    %v1588 = vmul.f32 %v1583, %v1587
    %vm1589 = vweird.f32 %v1572
    %vm1590 = vweird.f32 %v1583
    %vm1591 = vmor %vm1589, %vm1590
    %v1592 = vsel %vm1591, %v1583, %v1588
    %v1593 = vmul.f32 %v1559, %v1582
    %v1594 = vmul.f32 %v1560, %v1592
    %1595 = vrot.lane.b32.xlu0 %v1481, 64
    %v1596 = vpop.permute.xlu0 %1595
    %v1598 = vmul.f32 %v1593, %v1596
    %v1599 = vmul.f32 %v1594, %v1596
    %1600 = vrot.lane.b32.xlu0 %v1481, 32
    %v1601 = vpop.permute.xlu0 %1600
    %v1603 = vadd.f32 %v1598, %v1601
    %v1604 = vadd.f32 %v1599, %v1601
    %1605 = vst.msk [vmem:[#allocation2] sm:$0xff] %vm81, %v1603
    %1606 = vst.msk [vmem:[#allocation2 + $0x8] sm:$0xff] %vm81, %v1604
    // Predicated region
    $region14: #{decoder_forward.1} parent=1 // pred_check
      _
    $region15: #{decoder_forward.1} parent=1 // pred_check_branch
      %1608 = sbr.rel (0) target = $region17
    $region16: #{decoder_forward.1} parent=1 // pred_region
      %1610 = vsyncadd [#allocation3], 0
      %s1611 = sshll.u32 [#allocation2], 4
      %s1612 = int_to_ptr.vmem [resolvable:$true] %s1611
      %s1613 = sshll.u32 %s3, 4
      %s1614 = int_to_ptr.hbm [resolvable:$true] %s1613
      %1619 = dma.vmem_to_hbm [thread:$0]  %s1612, 256, %s1614, [#allocation3], 128, 128, 8
    $region17: #{decoder_forward.1} parent=1 // pred_fallthru
      _
    // Predicated region
    $region18: #{decoder_forward.1} parent=1 // pred_check
      _
    $region19: #{decoder_forward.1} parent=1 // pred_check_branch
      %1621 = sbr.rel (0) target = $region21
    $region20: #{decoder_forward.1} parent=1 // pred_region
      %1623 = dma.done [#allocation3], 256
    $region21: #{decoder_forward.1} parent=1 // pred_fallthru
      _
    %1624 = vsyncpa [#allocation3], 1

</llo_original>
